<compile_context>
chip_gen: v5e
topology: v5e:2x2
jax: 0.10.0
libtpu: 0.0.40
codegen_flags: <defaults>
</compile_context>

<pallas_src>
import functools
import math

import jax
import jax.numpy as jnp
from jax.experimental import pallas as pl
from jax.experimental.pallas import tpu as pltpu


# ----------------------------------------------------------------------------
# Kernel: one (batch-tile, q-tile) block per grid step.
#   q_ref : (bt, tq, D)      k_ref/v_ref : (bt, Lk, D)
#   w*    : (D, D)  (already transposed from torch's (out, in));  b* : (1, D)
#   out   : (bt, tq, D)
#   kc/vc : VMEM scratch (bt, Lk, D) in compute dtype — projected K/V cache.
# ----------------------------------------------------------------------------
def _self_attention_kernel(q_ref, k_ref, v_ref,
                           wq_ref, bq_ref, wk_ref, bk_ref,
                           wv_ref, bv_ref, wo_ref, bo_ref,
                           out_ref, kc_ref, vc_ref, *,
                           num_heads, head_dim, causal, compute_dtype):
    bt, tq, d = q_ref.shape
    lk = k_ref.shape[1]
    cdt = compute_dtype

    def project(x_ref, rows, w_ref, b_ref):
        # Lane-dense (bt*rows, D) x (D, D) matmul; f32 accumulation + bias.
        x = x_ref[...].reshape(bt * rows, d).astype(cdt)
        w = w_ref[...].astype(cdt)
        return jnp.dot(x, w, preferred_element_type=jnp.float32) + b_ref[...]

    # --- K/V projections: computed ONCE per batch tile (grid axis 1 is
    # "arbitrary", so the scratch cache is valid for every q tile of this
    # batch tile) and stored in the MXU compute dtype. ------------------------
    @pl.when(pl.program_id(1) == 0)
    def _():
        kc_ref[...] = project(k_ref, lk, wk_ref, bk_ref).astype(cdt).reshape(bt, lk, d)
        vc_ref[...] = project(v_ref, lk, wv_ref, bv_ref).astype(cdt).reshape(bt, lk, d)

    # --- Q projection; fold the 1/sqrt(head_dim) scale into q once. ----------
    scale = 1.0 / math.sqrt(head_dim)
    q_c = (project(q_ref, tq, wq_ref, bq_ref) * scale).astype(cdt).reshape(bt, tq, d)
    k_c = kc_ref[...]
    v_c = vc_ref[...]

    if causal:
        # Global query row index = q-tile offset + local row; 2-D mask with
        # implicit broadcast over the batch-tile dim (no bt-wide bool vregs).
        q0 = pl.program_id(1) * tq
        rows = q0 + jax.lax.broadcasted_iota(jnp.int32, (tq, lk), 0)
        cols = jax.lax.broadcasted_iota(jnp.int32, (tq, lk), 1)
        keep = (rows >= cols)[None]                       # (1, tq, lk)

    def head_attention(h):
        lo = h * head_dim
        hi = lo + head_dim
        qh = q_c[:, :, lo:hi]                             # (bt, tq, dk)
        kh = k_c[:, :, lo:hi]                             # (bt, lk, dk)
        vh = v_c[:, :, lo:hi]                             # (bt, lk, dk)

        s = jax.lax.dot_general(                          # (bt, tq, lk) f32
            qh, kh, (((2,), (2,)), ((0,), (0,))),
            preferred_element_type=jnp.float32)
        if causal:
            s = jnp.where(keep, s, -1e30)                 # torch masked_fill(-inf)

        # Softmax over keys, all in f32; reciprocal on the EUP slot.
        m = jnp.max(s, axis=-1, keepdims=True)
        e = jnp.exp(s - m)
        p = e * pl.reciprocal(jnp.sum(e, axis=-1, keepdims=True), approx=True)

        return jax.lax.dot_general(                       # (bt, tq, dk) f32
            p.astype(cdt), vh, (((2,), (1,)), ((0,), (0,))),
            preferred_element_type=jnp.float32)

    if num_heads == 1 or head_dim >= 128:
        # Single out-projection with K = model_dim (full MXU row utilization).
        if num_heads == 1:
            ctx_full = head_attention(0)
        else:
            ctx_full = jnp.concatenate(
                [head_attention(h) for h in range(num_heads)], axis=-1)
        y = jnp.dot(ctx_full.reshape(bt * tq, d).astype(cdt),
                    wo_ref[...].astype(cdt),
                    preferred_element_type=jnp.float32)
    else:
        # head_dim < 128: accumulate per-head slices of W_o (avoids masked
        # lane-slice concatenation/stores for tiny head dims).
        y = jnp.zeros((bt * tq, d), jnp.float32)
        for h in range(num_heads):                        # static -> unrolled
            ctx = head_attention(h)
            wo_h = wo_ref[h * head_dim:(h + 1) * head_dim, :].astype(cdt)
            y = y + jnp.dot(ctx.reshape(bt * tq, head_dim).astype(cdt), wo_h,
                            preferred_element_type=jnp.float32)

    y = y + bo_ref[...]
    # TODO(synk): for model_dim < 128 this store is lane-masked; a lane-dense
    # repack of the output block was skipped to keep layouts identical to torch.
    out_ref[...] = y.reshape(bt, tq, d).astype(out_ref.dtype)


# ----------------------------------------------------------------------------
# Tile selection with corrected VMEM accounting.
# ----------------------------------------------------------------------------
def _choose_tiles(b, lq, lk, d, in_itemsize, cdt_itemsize):
    """Pick (batch_tile, q_tile, vmem_limit_bytes).

    Favors a large q tile (big MXU M dimension, per review), then grows the
    batch tile until the per-step activation footprint — including double
    buffering of q/k/v/out blocks, the projected-K/V VMEM cache, resident
    weights and f32 intermediates — hits a budget scaled to the chip's VMEM
    (~2-4 MiB/step on v7x, ~8 MiB on v5e/v6e)."""
    try:
        vmem_cap = int(pltpu.get_tpu_info().vmem_capacity_bytes)
    except Exception:  # pragma: no cover - conservative fallback (v7x floor)
        vmem_cap = 64 * 1024 * 1024
    budget = max(2 << 20, min(vmem_cap // 16, 8 << 20))

    bq = lq if lq <= 512 else 512
    if bq < lq and bq % 8:
        bq -= bq % 8                      # (8,128) rule: multiple of 8 or full

    weight_bytes = 2 * (4 * d * d + 4 * d) * 4        # double-buffered f32 weights
    # TODO(synk): pipeline_mode=pl.Buffered(1) on the constant-index weight
    # specs would halve this residency (most valuable for large D on v7x).

    def step_bytes(bb):
        io = 2 * bb * (bq + 2 * lk) * d * in_itemsize     # q/k/v blocks, 2 buffers
        io += 2 * bb * bq * d * in_itemsize               # output block, 2 buffers
        cache = 2 * bb * lk * d * cdt_itemsize            # projected K/V scratch
        live = bb * (3 * bq * d + 3 * bq * lk) * 4        # f32 intermediates
        return io + cache + live

    bb = 1
    while bb < b and step_bytes(min(2 * bb, b)) + weight_bytes <= budget:
        bb = min(2 * bb, b)
    if b > 1:
        # Keep >= 2 batch tiles so the (single) parallel grid axis can feed
        # both v7x TensorCores; on v5e/v6e the one extra step is negligible.
        bb = min(bb, -(-b // 2))

    footprint = step_bytes(bb) + weight_bytes
    vmem_limit = int(min(56 << 20, max(32 << 20, 2 * footprint)))
    return bb, bq, vmem_limit


# ----------------------------------------------------------------------------
# Wrapper
# ----------------------------------------------------------------------------
def self_attention_forward(params, query, key, value, *, mask=False,
                           compute_dtype=jnp.bfloat16,
                           block_b=None, block_q=None):
    """query/key/value: (..., length, model_dim).  Returns same shape as query."""
    d = query.shape[-1]
    h = int(params["num_heads"])
    assert d % h == 0, "model_dim must be divisible by num_heads"
    dk = d // h

    lead = query.shape[:-2]
    lq = query.shape[-2]
    lk = key.shape[-2]
    assert key.shape[:-2] == lead and value.shape[:-2] == lead
    assert value.shape[-2] == lk and key.shape[-1] == d and value.shape[-1] == d

    b = math.prod(lead) if lead else 1
    qf = query.reshape(b, lq, d)      # free reshapes -- no host transposes
    kf = key.reshape(b, lk, d)
    vf = value.reshape(b, lk, d)

    in_itemsize = jnp.dtype(query.dtype).itemsize
    cdt_itemsize = jnp.dtype(compute_dtype).itemsize
    auto_bb, auto_bq, vmem_limit = _choose_tiles(b, lq, lk, d,
                                                 in_itemsize, cdt_itemsize)
    bb = block_b or auto_bb
    bq = block_q or auto_bq
    grid = (pl.cdiv(b, bb), pl.cdiv(lq, bq))

    kernel = functools.partial(
        _self_attention_kernel,
        num_heads=h, head_dim=dk, causal=bool(mask),
        compute_dtype=compute_dtype)

    def fixed(shape):
        # Constant-index block: DMA'd once, revisited every grid step.
        return pl.BlockSpec(shape, lambda i, j: (0,) * len(shape))

    # Advisory cost estimate (K/V are projected once per batch row now).
    flops = 2 * b * d * d * (lq + 2 * lk)          # Q/K/V projections
    flops += 2 * 2 * b * lq * lk * d               # scores + attn @ v
    flops += 2 * b * lq * d * d                    # output projection
    transcendentals = b * h * lq * lk              # exp in softmax
    bytes_accessed = in_itemsize * (2 * b * lq * d + 2 * b * lk * d) \
        + 4 * (4 * d * d + 4 * d)

    out = pl.pallas_call(
        kernel,
        out_shape=jax.ShapeDtypeStruct((b, lq, d), query.dtype),
        grid_spec=pltpu.PrefetchScalarGridSpec(
            num_scalar_prefetch=0,
            grid=grid,
            in_specs=[
                pl.BlockSpec((bb, bq, d), lambda i, j: (i, j, 0)),   # q
                pl.BlockSpec((bb, lk, d), lambda i, j: (i, 0, 0)),   # k (per batch tile)
                pl.BlockSpec((bb, lk, d), lambda i, j: (i, 0, 0)),   # v (per batch tile)
                fixed((d, d)), fixed((1, d)),                        # Wq, bq
                fixed((d, d)), fixed((1, d)),                        # Wk, bk
                fixed((d, d)), fixed((1, d)),                        # Wv, bv
                fixed((d, d)), fixed((1, d)),                        # Wo, bo
            ],
            out_specs=pl.BlockSpec((bb, bq, d), lambda i, j: (i, j, 0)),
            scratch_shapes=[pltpu.VMEM((bb, lk, d), compute_dtype),   # projected K
                            pltpu.VMEM((bb, lk, d), compute_dtype)],  # projected V
        ),
        compiler_params=pltpu.CompilerParams(
            dimension_semantics=("parallel", "arbitrary"),
            vmem_limit_bytes=vmem_limit),
        cost_estimate=pl.CostEstimate(
            flops=flops, transcendentals=transcendentals,
            bytes_accessed=bytes_accessed),
    )(qf, kf, vf,
      params["wq"], params["bq"], params["wk"], params["bk"],
      params["wv"], params["bv"], params["wo"], params["bo"])

    return out.reshape(*lead, lq, d)


# ----------------------------------------------------------------------------
# Deterministic parameter init (weights stored as (in, out) = torch W^T)
# ----------------------------------------------------------------------------
def init_params(key, model_dim, num_heads):
    ks = jax.random.split(key, 8)
    bound = math.sqrt(6.0 / (model_dim + model_dim))

    def linear_params(kw, kb):
        w = jax.random.uniform(kw, (model_dim, model_dim), jnp.float32, -bound, bound)
        bias = jax.random.uniform(kb, (1, model_dim), jnp.float32, -0.1, 0.1)
        return w, bias

    wq, bq = linear_params(ks[0], ks[1])
    wk, bk = linear_params(ks[2], ks[3])
    wv, bv = linear_params(ks[4], ks[5])
    wo, bo = linear_params(ks[6], ks[7])
    return {"num_heads": num_heads,
            "wq": wq, "bq": bq, "wk": wk, "bk": bk,
            "wv": wv, "bv": bv, "wo": wo, "bo": bo}


# ----------------------------------------------------------------------------
# Pure-JAX reference (mirrors the torch forward exactly)
# ----------------------------------------------------------------------------
def self_attention_reference(params, query, key, value, mask=False):
    d = query.shape[-1]
    h = int(params["num_heads"])
    dk = d // h
    hp = jax.lax.Precision.HIGHEST

    def linear(x, w, bias):
        return jnp.einsum("...ld,de->...le", x, w, precision=hp) + bias[0]

    q = linear(query, params["wq"], params["bq"])
    k = linear(key, params["wk"], params["bk"])
    v = linear(value, params["wv"], params["bv"])

    def split_heads(x):
        *lead, l, _ = x.shape
        x = x.reshape(*lead, l, h, dk)
        return jnp.moveaxis(x, -2, 0)                 # (h, ..., l, dk)

    qh, kh, vh = split_heads(q), split_heads(k), split_heads(v)
    s = jnp.einsum("...qd,...kd->...qk", qh, kh, precision=hp) / math.sqrt(dk)
    if mask:
        tl, sl = q.shape[-2], k.shape[-2]
        keep = jnp.tril(jnp.ones((tl, sl), bool))
        s = jnp.where(keep, s, -jnp.inf)
    p = jax.nn.softmax(s, axis=-1)
    o = jnp.einsum("...qk,...kd->...qd", p, vh, precision=hp)    # (h, ..., l, dk)
    o = jnp.moveaxis(o, 0, -2)                                    # (..., l, h, dk)
    o = o.reshape(*o.shape[:-2], h * dk)
    return jnp.einsum("...ld,de->...le", o, params["wo"], precision=hp) + params["bo"][0]


if __name__ == "__main__":
    model_dim, num_heads = 32, 4
    batch, in_steps, num_nodes = 2, 4, 16   # attention runs across the nodes axis

    root = jax.random.PRNGKey(0)
    kp, kq, kk, kv = jax.random.split(root, 4)
    params = init_params(kp, model_dim, num_heads)

    query = jax.random.normal(kq, (batch, in_steps, num_nodes, model_dim), jnp.float32)
    key_t = jax.random.normal(kk, (batch, in_steps, num_nodes, model_dim), jnp.float32)
    value = jax.random.normal(kv, (batch, in_steps, num_nodes, model_dim), jnp.float32)

    ref = self_attention_reference(params, query, key_t, value, mask=False)

    # f32 compute path.
    out_f32 = jax.block_until_ready(
        self_attention_forward(params, query, key_t, value, mask=False,
                               compute_dtype=jnp.float32))
    assert out_f32.shape == (batch, in_steps, num_nodes, model_dim)
    assert jnp.allclose(out_f32, ref, rtol=2e-2, atol=2e-2), "f32 kernel mismatch"

    # bf16 MXU path (f32 accumulation + f32 softmax).
    out_bf16 = jax.block_until_ready(
        self_attention_forward(params, query, key_t, value, mask=False,
                               compute_dtype=jnp.bfloat16))
    assert jnp.allclose(out_bf16, ref, rtol=5e-2, atol=5e-2), "bf16 kernel mismatch"

    # Causal-mask variant (mask=True in the module).
    ref_m = self_attention_reference(params, query, key_t, value, mask=True)
    out_m = jax.block_until_ready(
        self_attention_forward(params, query, key_t, value, mask=True,
                               compute_dtype=jnp.float32))
    assert jnp.allclose(out_m, ref_m, rtol=2e-2, atol=2e-2), "masked kernel mismatch"

    print("KERNEL_OK")
</pallas_src>

<mosaic_0001>
module attributes {stable_mosaic.version = 11 : i64} {
  func.func @_self_attention_kernel(%arg0: i32, %arg1: i32, %arg2: memref<4x16x32xf32, #tpu.memory_space<vmem>>, %arg3: memref<4x16x32xf32, #tpu.memory_space<vmem>>, %arg4: memref<4x16x32xf32, #tpu.memory_space<vmem>>, %arg5: memref<32x32xf32, #tpu.memory_space<vmem>>, %arg6: memref<1x32xf32, #tpu.memory_space<vmem>>, %arg7: memref<32x32xf32, #tpu.memory_space<vmem>>, %arg8: memref<1x32xf32, #tpu.memory_space<vmem>>, %arg9: memref<32x32xf32, #tpu.memory_space<vmem>>, %arg10: memref<1x32xf32, #tpu.memory_space<vmem>>, %arg11: memref<32x32xf32, #tpu.memory_space<vmem>>, %arg12: memref<1x32xf32, #tpu.memory_space<vmem>>, %arg13: memref<4x16x32xf32, #tpu.memory_space<vmem>>, %arg14: memref<4x16x32xf32, #tpu.memory_space<vmem>>, %arg15: memref<4x16x32xf32, #tpu.memory_space<vmem>>) attributes {dimension_semantics = [#tpu.dimension_semantics<parallel>, #tpu.dimension_semantics<arbitrary>], iteration_bounds = array<i64: 2, 1>, scalar_prefetch = 0 : i64, scratch_operands = 2 : i64, tpu.core_type = #tpu.core_type<tc>, window_params = [{transform_indices = @transform_0, window_bounds = array<i64: 4, 16, 32>}, {transform_indices = @transform_1, window_bounds = array<i64: 4, 16, 32>}, {transform_indices = @transform_2, window_bounds = array<i64: 4, 16, 32>}, {pipeline_mode = #tpu.pipeline_mode<synchronous>, transform_indices = @transform_3, window_bounds = array<i64: 32, 32>}, {pipeline_mode = #tpu.pipeline_mode<synchronous>, transform_indices = @transform_4, window_bounds = array<i64: 1, 32>}, {pipeline_mode = #tpu.pipeline_mode<synchronous>, transform_indices = @transform_5, window_bounds = array<i64: 32, 32>}, {pipeline_mode = #tpu.pipeline_mode<synchronous>, transform_indices = @transform_6, window_bounds = array<i64: 1, 32>}, {pipeline_mode = #tpu.pipeline_mode<synchronous>, transform_indices = @transform_7, window_bounds = array<i64: 32, 32>}, {pipeline_mode = #tpu.pipeline_mode<synchronous>, transform_indices = @transform_8, window_bounds = array<i64: 1, 32>}, {pipeline_mode = #tpu.pipeline_mode<synchronous>, transform_indices = @transform_9, window_bounds = array<i64: 32, 32>}, {pipeline_mode = #tpu.pipeline_mode<synchronous>, transform_indices = @transform_10, window_bounds = array<i64: 1, 32>}, {transform_indices = @transform_11, window_bounds = array<i64: 4, 16, 32>}]} {
    %c0_i32 = arith.constant 0 : i32
    %0 = arith.cmpi eq, %arg1, %c0_i32 : i32
    %1 = arith.extui %0 : i1 to i32
    %c0_i32_0 = arith.constant 0 : i32
    %2 = arith.cmpi ne, %1, %c0_i32_0 : i32
    scf.if %2 {
      %c0_45 = arith.constant 0 : index
      %c0_46 = arith.constant 0 : index
      %c0_47 = arith.constant 0 : index
      %97 = vector.load %arg3[%c0_45, %c0_46, %c0_47] : memref<4x16x32xf32, #tpu.memory_space<vmem>>, vector<4x16x32xf32>
      %98 = vector.shape_cast %97 : vector<4x16x32xf32> to vector<64x32xf32>
      %c0_48 = arith.constant 0 : index
      %c0_49 = arith.constant 0 : index
      %99 = vector.load %arg7[%c0_48, %c0_49] : memref<32x32xf32, #tpu.memory_space<vmem>>, vector<32x32xf32>
      %cst_50 = arith.constant dense<0.000000e+00> : vector<64x32xf32>
      %100 = tpu.matmul %98, %99, %cst_50 {dimension_numbers = #tpu.dot_dimension_numbers<[1], [0], [0], [1], [0, 0, 1, 1], [], []>} : vector<64x32xf32>, vector<32x32xf32>, vector<64x32xf32> -> vector<64x32xf32>
      %c0_51 = arith.constant 0 : index
      %c0_52 = arith.constant 0 : index
      %101 = vector.load %arg8[%c0_51, %c0_52] : memref<1x32xf32, #tpu.memory_space<vmem>>, vector<1x32xf32>
      %102 = vector.broadcast %101 : vector<1x32xf32> to vector<64x32xf32>
      %103 = arith.addf %100, %102 : vector<64x32xf32>
      %104 = vector.shape_cast %103 : vector<64x32xf32> to vector<4x16x32xf32>
      %c0_53 = arith.constant 0 : index
      %c0_54 = arith.constant 0 : index
      %c0_55 = arith.constant 0 : index
      %105 = vector.load %arg14[%c0_53, %c0_54, %c0_55] : memref<4x16x32xf32, #tpu.memory_space<vmem>>, vector<4x16x32xf32>
      tpu.vector_store %arg14[%c0_53, %c0_54, %c0_55], %104 {strides = array<i32>} : memref<4x16x32xf32, #tpu.memory_space<vmem>>, vector<4x16x32xf32>,
      %c0_56 = arith.constant 0 : index
      %c0_57 = arith.constant 0 : index
      %c0_58 = arith.constant 0 : index
      %106 = vector.load %arg4[%c0_56, %c0_57, %c0_58] : memref<4x16x32xf32, #tpu.memory_space<vmem>>, vector<4x16x32xf32>
      %107 = vector.shape_cast %106 : vector<4x16x32xf32> to vector<64x32xf32>
      %c0_59 = arith.constant 0 : index
      %c0_60 = arith.constant 0 : index
      %108 = vector.load %arg9[%c0_59, %c0_60] : memref<32x32xf32, #tpu.memory_space<vmem>>, vector<32x32xf32>
      %cst_61 = arith.constant dense<0.000000e+00> : vector<64x32xf32>
      %109 = tpu.matmul %107, %108, %cst_61 {dimension_numbers = #tpu.dot_dimension_numbers<[1], [0], [0], [1], [0, 0, 1, 1], [], []>} : vector<64x32xf32>, vector<32x32xf32>, vector<64x32xf32> -> vector<64x32xf32>
      %c0_62 = arith.constant 0 : index
      %c0_63 = arith.constant 0 : index
      %110 = vector.load %arg10[%c0_62, %c0_63] : memref<1x32xf32, #tpu.memory_space<vmem>>, vector<1x32xf32>
      %111 = vector.broadcast %110 : vector<1x32xf32> to vector<64x32xf32>
      %112 = arith.addf %109, %111 : vector<64x32xf32>
      %113 = vector.shape_cast %112 : vector<64x32xf32> to vector<4x16x32xf32>
      %c0_64 = arith.constant 0 : index
      %c0_65 = arith.constant 0 : index
      %c0_66 = arith.constant 0 : index
      %114 = vector.load %arg15[%c0_64, %c0_65, %c0_66] : memref<4x16x32xf32, #tpu.memory_space<vmem>>, vector<4x16x32xf32>
      tpu.vector_store %arg15[%c0_64, %c0_65, %c0_66], %113 {strides = array<i32>} : memref<4x16x32xf32, #tpu.memory_space<vmem>>, vector<4x16x32xf32>,
    } else {
    }
    %c0 = arith.constant 0 : index
    %c0_1 = arith.constant 0 : index
    %c0_2 = arith.constant 0 : index
    %3 = vector.load %arg2[%c0, %c0_1, %c0_2] : memref<4x16x32xf32, #tpu.memory_space<vmem>>, vector<4x16x32xf32>
    %4 = vector.shape_cast %3 : vector<4x16x32xf32> to vector<64x32xf32>
    %c0_3 = arith.constant 0 : index
    %c0_4 = arith.constant 0 : index
    %5 = vector.load %arg5[%c0_3, %c0_4] : memref<32x32xf32, #tpu.memory_space<vmem>>, vector<32x32xf32>
    %cst = arith.constant dense<0.000000e+00> : vector<64x32xf32>
    %6 = tpu.matmul %4, %5, %cst {dimension_numbers = #tpu.dot_dimension_numbers<[1], [0], [0], [1], [0, 0, 1, 1], [], []>} : vector<64x32xf32>, vector<32x32xf32>, vector<64x32xf32> -> vector<64x32xf32>
    %c0_5 = arith.constant 0 : index
    %c0_6 = arith.constant 0 : index
    %7 = vector.load %arg6[%c0_5, %c0_6] : memref<1x32xf32, #tpu.memory_space<vmem>>, vector<1x32xf32>
    %8 = vector.broadcast %7 : vector<1x32xf32> to vector<64x32xf32>
    %9 = arith.addf %6, %8 : vector<64x32xf32>
    %cst_7 = arith.constant 0.353553385 : f32
    %10 = vector.broadcast %cst_7 : f32 to vector<64x32xf32>
    %11 = arith.mulf %9, %10 : vector<64x32xf32>
    %12 = vector.shape_cast %11 : vector<64x32xf32> to vector<4x16x32xf32>
    %c0_8 = arith.constant 0 : index
    %c0_9 = arith.constant 0 : index
    %c0_10 = arith.constant 0 : index
    %13 = vector.load %arg14[%c0_8, %c0_9, %c0_10] : memref<4x16x32xf32, #tpu.memory_space<vmem>>, vector<4x16x32xf32>
    %c0_11 = arith.constant 0 : index
    %c0_12 = arith.constant 0 : index
    %c0_13 = arith.constant 0 : index
    %14 = vector.load %arg15[%c0_11, %c0_12, %c0_13] : memref<4x16x32xf32, #tpu.memory_space<vmem>>, vector<4x16x32xf32>
    %cst_14 = arith.constant 0.000000e+00 : f32
    %15 = vector.broadcast %cst_14 : f32 to vector<64x32xf32>
    %16 = vector.extract_strided_slice %12 {offsets = [0, 0, 0], sizes = [4, 16, 8], strides = [1, 1, 1]} : vector<4x16x32xf32> to vector<4x16x8xf32>
    %17 = vector.extract_strided_slice %13 {offsets = [0, 0, 0], sizes = [4, 16, 8], strides = [1, 1, 1]} : vector<4x16x32xf32> to vector<4x16x8xf32>
    %18 = vector.extract_strided_slice %14 {offsets = [0, 0, 0], sizes = [4, 16, 8], strides = [1, 1, 1]} : vector<4x16x32xf32> to vector<4x16x8xf32>
    %cst_15 = arith.constant dense<0.000000e+00> : vector<4x16x16xf32>
    %19 = tpu.matmul %16, %17, %cst_15 {dimension_numbers = #tpu.dot_dimension_numbers<[2], [2], [1], [1], [0, 0, 0, 1, 1, 1], [0], [0]>} : vector<4x16x8xf32>, vector<4x16x8xf32>, vector<4x16x16xf32> -> vector<4x16x16xf32>
    %cst_16 = arith.constant dense<0xFF800000> : vector<4x16xf32>
    %20 = vector.multi_reduction <maximumf>, %19, %cst_16 [2] : vector<4x16x16xf32> to vector<4x16xf32>
    %21 = vector.shape_cast %20 : vector<4x16xf32> to vector<4x16x1xf32>
    %22 = vector.broadcast %21 : vector<4x16x1xf32> to vector<4x16x16xf32>
    %23 = arith.subf %19, %22 : vector<4x16x16xf32>
    %24 = math.exp %23 : vector<4x16x16xf32>
    %cst_17 = arith.constant dense<0.000000e+00> : vector<4x16xf32>
    %25 = vector.multi_reduction <add>, %24, %cst_17 [2] : vector<4x16x16xf32> to vector<4x16xf32>
    %26 = vector.shape_cast %25 : vector<4x16xf32> to vector<4x16x1xf32>
    %27 = tpu.reciprocal %26 {approx = true} : vector<4x16x1xf32> -> vector<4x16x1xf32>
    %28 = vector.broadcast %27 : vector<4x16x1xf32> to vector<4x16x16xf32>
    %29 = arith.mulf %24, %28 : vector<4x16x16xf32>
    %cst_18 = arith.constant dense<0.000000e+00> : vector<4x16x8xf32>
    %30 = tpu.matmul %29, %18, %cst_18 {dimension_numbers = #tpu.dot_dimension_numbers<[2], [1], [1], [2], [0, 0, 0, 1, 1, 2], [0], [0]>} : vector<4x16x16xf32>, vector<4x16x8xf32>, vector<4x16x8xf32> -> vector<4x16x8xf32>
    %c0_19 = arith.constant 0 : index
    %c0_20 = arith.constant 0 : index
    %31 = vector.load %arg11[%c0_19, %c0_20] : memref<32x32xf32, #tpu.memory_space<vmem>>, vector<8x32xf32>
    %32 = vector.shape_cast %30 : vector<4x16x8xf32> to vector<64x8xf32>
    %cst_21 = arith.constant dense<0.000000e+00> : vector<64x32xf32>
    %33 = tpu.matmul %32, %31, %cst_21 {dimension_numbers = #tpu.dot_dimension_numbers<[1], [0], [0], [1], [0, 0, 1, 1], [], []>} : vector<64x8xf32>, vector<8x32xf32>, vector<64x32xf32> -> vector<64x32xf32>
    %34 = arith.addf %15, %33 : vector<64x32xf32>
    %35 = vector.extract_strided_slice %12 {offsets = [0, 0, 8], sizes = [4, 16, 8], strides = [1, 1, 1]} : vector<4x16x32xf32> to vector<4x16x8xf32>
    %36 = vector.extract_strided_slice %13 {offsets = [0, 0, 8], sizes = [4, 16, 8], strides = [1, 1, 1]} : vector<4x16x32xf32> to vector<4x16x8xf32>
    %37 = vector.extract_strided_slice %14 {offsets = [0, 0, 8], sizes = [4, 16, 8], strides = [1, 1, 1]} : vector<4x16x32xf32> to vector<4x16x8xf32>
    %cst_22 = arith.constant dense<0.000000e+00> : vector<4x16x16xf32>
    %38 = tpu.matmul %35, %36, %cst_22 {dimension_numbers = #tpu.dot_dimension_numbers<[2], [2], [1], [1], [0, 0, 0, 1, 1, 1], [0], [0]>} : vector<4x16x8xf32>, vector<4x16x8xf32>, vector<4x16x16xf32> -> vector<4x16x16xf32>
    %cst_23 = arith.constant dense<0xFF800000> : vector<4x16xf32>
    %39 = vector.multi_reduction <maximumf>, %38, %cst_23 [2] : vector<4x16x16xf32> to vector<4x16xf32>
    %40 = vector.shape_cast %39 : vector<4x16xf32> to vector<4x16x1xf32>
    %41 = vector.broadcast %40 : vector<4x16x1xf32> to vector<4x16x16xf32>
    %42 = arith.subf %38, %41 : vector<4x16x16xf32>
    %43 = math.exp %42 : vector<4x16x16xf32>
    %cst_24 = arith.constant dense<0.000000e+00> : vector<4x16xf32>
    %44 = vector.multi_reduction <add>, %43, %cst_24 [2] : vector<4x16x16xf32> to vector<4x16xf32>
    %45 = vector.shape_cast %44 : vector<4x16xf32> to vector<4x16x1xf32>
    %46 = tpu.reciprocal %45 {approx = true} : vector<4x16x1xf32> -> vector<4x16x1xf32>
    %47 = vector.broadcast %46 : vector<4x16x1xf32> to vector<4x16x16xf32>
    %48 = arith.mulf %43, %47 : vector<4x16x16xf32>
    %cst_25 = arith.constant dense<0.000000e+00> : vector<4x16x8xf32>
    %49 = tpu.matmul %48, %37, %cst_25 {dimension_numbers = #tpu.dot_dimension_numbers<[2], [1], [1], [2], [0, 0, 0, 1, 1, 2], [0], [0]>} : vector<4x16x16xf32>, vector<4x16x8xf32>, vector<4x16x8xf32> -> vector<4x16x8xf32>
    %c8 = arith.constant 8 : index
    %c0_26 = arith.constant 0 : index
    %50 = vector.load %arg11[%c8, %c0_26] : memref<32x32xf32, #tpu.memory_space<vmem>>, vector<8x32xf32>
    %51 = vector.shape_cast %49 : vector<4x16x8xf32> to vector<64x8xf32>
    %cst_27 = arith.constant dense<0.000000e+00> : vector<64x32xf32>
    %52 = tpu.matmul %51, %50, %cst_27 {dimension_numbers = #tpu.dot_dimension_numbers<[1], [0], [0], [1], [0, 0, 1, 1], [], []>} : vector<64x8xf32>, vector<8x32xf32>, vector<64x32xf32> -> vector<64x32xf32>
    %53 = arith.addf %34, %52 : vector<64x32xf32>
    %54 = vector.extract_strided_slice %12 {offsets = [0, 0, 16], sizes = [4, 16, 8], strides = [1, 1, 1]} : vector<4x16x32xf32> to vector<4x16x8xf32>
    %55 = vector.extract_strided_slice %13 {offsets = [0, 0, 16], sizes = [4, 16, 8], strides = [1, 1, 1]} : vector<4x16x32xf32> to vector<4x16x8xf32>
    %56 = vector.extract_strided_slice %14 {offsets = [0, 0, 16], sizes = [4, 16, 8], strides = [1, 1, 1]} : vector<4x16x32xf32> to vector<4x16x8xf32>
    %cst_28 = arith.constant dense<0.000000e+00> : vector<4x16x16xf32>
    %57 = tpu.matmul %54, %55, %cst_28 {dimension_numbers = #tpu.dot_dimension_numbers<[2], [2], [1], [1], [0, 0, 0, 1, 1, 1], [0], [0]>} : vector<4x16x8xf32>, vector<4x16x8xf32>, vector<4x16x16xf32> -> vector<4x16x16xf32>
    %cst_29 = arith.constant dense<0xFF800000> : vector<4x16xf32>
    %58 = vector.multi_reduction <maximumf>, %57, %cst_29 [2] : vector<4x16x16xf32> to vector<4x16xf32>
    %59 = vector.shape_cast %58 : vector<4x16xf32> to vector<4x16x1xf32>
    %60 = vector.broadcast %59 : vector<4x16x1xf32> to vector<4x16x16xf32>
    %61 = arith.subf %57, %60 : vector<4x16x16xf32>
    %62 = math.exp %61 : vector<4x16x16xf32>
    %cst_30 = arith.constant dense<0.000000e+00> : vector<4x16xf32>
    %63 = vector.multi_reduction <add>, %62, %cst_30 [2] : vector<4x16x16xf32> to vector<4x16xf32>
    %64 = vector.shape_cast %63 : vector<4x16xf32> to vector<4x16x1xf32>
    %65 = tpu.reciprocal %64 {approx = true} : vector<4x16x1xf32> -> vector<4x16x1xf32>
    %66 = vector.broadcast %65 : vector<4x16x1xf32> to vector<4x16x16xf32>
    %67 = arith.mulf %62, %66 : vector<4x16x16xf32>
    %cst_31 = arith.constant dense<0.000000e+00> : vector<4x16x8xf32>
    %68 = tpu.matmul %67, %56, %cst_31 {dimension_numbers = #tpu.dot_dimension_numbers<[2], [1], [1], [2], [0, 0, 0, 1, 1, 2], [0], [0]>} : vector<4x16x16xf32>, vector<4x16x8xf32>, vector<4x16x8xf32> -> vector<4x16x8xf32>
    %c16 = arith.constant 16 : index
    %c0_32 = arith.constant 0 : index
    %69 = vector.load %arg11[%c16, %c0_32] : memref<32x32xf32, #tpu.memory_space<vmem>>, vector<8x32xf32>
    %70 = vector.shape_cast %68 : vector<4x16x8xf32> to vector<64x8xf32>
    %cst_33 = arith.constant dense<0.000000e+00> : vector<64x32xf32>
    %71 = tpu.matmul %70, %69, %cst_33 {dimension_numbers = #tpu.dot_dimension_numbers<[1], [0], [0], [1], [0, 0, 1, 1], [], []>} : vector<64x8xf32>, vector<8x32xf32>, vector<64x32xf32> -> vector<64x32xf32>
    %72 = arith.addf %53, %71 : vector<64x32xf32>
    %73 = vector.extract_strided_slice %12 {offsets = [0, 0, 24], sizes = [4, 16, 8], strides = [1, 1, 1]} : vector<4x16x32xf32> to vector<4x16x8xf32>
    %74 = vector.extract_strided_slice %13 {offsets = [0, 0, 24], sizes = [4, 16, 8], strides = [1, 1, 1]} : vector<4x16x32xf32> to vector<4x16x8xf32>
    %75 = vector.extract_strided_slice %14 {offsets = [0, 0, 24], sizes = [4, 16, 8], strides = [1, 1, 1]} : vector<4x16x32xf32> to vector<4x16x8xf32>
    %cst_34 = arith.constant dense<0.000000e+00> : vector<4x16x16xf32>
    %76 = tpu.matmul %73, %74, %cst_34 {dimension_numbers = #tpu.dot_dimension_numbers<[2], [2], [1], [1], [0, 0, 0, 1, 1, 1], [0], [0]>} : vector<4x16x8xf32>, vector<4x16x8xf32>, vector<4x16x16xf32> -> vector<4x16x16xf32>
    %cst_35 = arith.constant dense<0xFF800000> : vector<4x16xf32>
    %77 = vector.multi_reduction <maximumf>, %76, %cst_35 [2] : vector<4x16x16xf32> to vector<4x16xf32>
    %78 = vector.shape_cast %77 : vector<4x16xf32> to vector<4x16x1xf32>
    %79 = vector.broadcast %78 : vector<4x16x1xf32> to vector<4x16x16xf32>
    %80 = arith.subf %76, %79 : vector<4x16x16xf32>
    %81 = math.exp %80 : vector<4x16x16xf32>
    %cst_36 = arith.constant dense<0.000000e+00> : vector<4x16xf32>
    %82 = vector.multi_reduction <add>, %81, %cst_36 [2] : vector<4x16x16xf32> to vector<4x16xf32>
    %83 = vector.shape_cast %82 : vector<4x16xf32> to vector<4x16x1xf32>
    %84 = tpu.reciprocal %83 {approx = true} : vector<4x16x1xf32> -> vector<4x16x1xf32>
    %85 = vector.broadcast %84 : vector<4x16x1xf32> to vector<4x16x16xf32>
    %86 = arith.mulf %81, %85 : vector<4x16x16xf32>
    %cst_37 = arith.constant dense<0.000000e+00> : vector<4x16x8xf32>
    %87 = tpu.matmul %86, %75, %cst_37 {dimension_numbers = #tpu.dot_dimension_numbers<[2], [1], [1], [2], [0, 0, 0, 1, 1, 2], [0], [0]>} : vector<4x16x16xf32>, vector<4x16x8xf32>, vector<4x16x8xf32> -> vector<4x16x8xf32>
    %c24 = arith.constant 24 : index
    %c0_38 = arith.constant 0 : index
    %88 = vector.load %arg11[%c24, %c0_38] : memref<32x32xf32, #tpu.memory_space<vmem>>, vector<8x32xf32>
    %89 = vector.shape_cast %87 : vector<4x16x8xf32> to vector<64x8xf32>
    %cst_39 = arith.constant dense<0.000000e+00> : vector<64x32xf32>
    %90 = tpu.matmul %89, %88, %cst_39 {dimension_numbers = #tpu.dot_dimension_numbers<[1], [0], [0], [1], [0, 0, 1, 1], [], []>} : vector<64x8xf32>, vector<8x32xf32>, vector<64x32xf32> -> vector<64x32xf32>
    %91 = arith.addf %72, %90 : vector<64x32xf32>
    %c0_40 = arith.constant 0 : index
    %c0_41 = arith.constant 0 : index
    %92 = vector.load %arg12[%c0_40, %c0_41] : memref<1x32xf32, #tpu.memory_space<vmem>>, vector<1x32xf32>
    %93 = vector.broadcast %92 : vector<1x32xf32> to vector<64x32xf32>
    %94 = arith.addf %91, %93 : vector<64x32xf32>
    %95 = vector.shape_cast %94 : vector<64x32xf32> to vector<4x16x32xf32>
    %c0_42 = arith.constant 0 : index
    %c0_43 = arith.constant 0 : index
    %c0_44 = arith.constant 0 : index
    %96 = vector.load %arg13[%c0_42, %c0_43, %c0_44] : memref<4x16x32xf32, #tpu.memory_space<vmem>>, vector<4x16x32xf32>
    tpu.vector_store %arg13[%c0_42, %c0_43, %c0_44], %95 {strides = array<i32>} : memref<4x16x32xf32, #tpu.memory_space<vmem>>, vector<4x16x32xf32>,
    return
  }
  func.func @transform_0(%arg0: i32, %arg1: i32) -> (i32, i32, i32) {
    %c0_i32 = arith.constant 0 : i32
    %c0_i32_0 = arith.constant 0 : i32
    return %arg0, %arg1, %c0_i32 : i32, i32, i32
  }
  func.func @transform_1(%arg0: i32, %arg1: i32) -> (i32, i32, i32) {
    %c0_i32 = arith.constant 0 : i32
    %c0_i32_0 = arith.constant 0 : i32
    %c0_i32_1 = arith.constant 0 : i32
    return %arg0, %c0_i32, %c0_i32_0 : i32, i32, i32
  }
  func.func @transform_2(%arg0: i32, %arg1: i32) -> (i32, i32, i32) {
    %c0_i32 = arith.constant 0 : i32
    %c0_i32_0 = arith.constant 0 : i32
    %c0_i32_1 = arith.constant 0 : i32
    return %arg0, %c0_i32, %c0_i32_0 : i32, i32, i32
  }
  func.func @transform_3(%arg0: i32, %arg1: i32) -> (i32, i32) {
    %c0_i32 = arith.constant 0 : i32
    %c0_i32_0 = arith.constant 0 : i32
    %c0_i32_1 = arith.constant 0 : i32
    return %c0_i32, %c0_i32_0 : i32, i32
  }
  func.func @transform_4(%arg0: i32, %arg1: i32) -> (i32, i32) {
    %c0_i32 = arith.constant 0 : i32
    %c0_i32_0 = arith.constant 0 : i32
    %c0_i32_1 = arith.constant 0 : i32
    return %c0_i32, %c0_i32_0 : i32, i32
  }
  func.func @transform_5(%arg0: i32, %arg1: i32) -> (i32, i32) {
    %c0_i32 = arith.constant 0 : i32
    %c0_i32_0 = arith.constant 0 : i32
    %c0_i32_1 = arith.constant 0 : i32
    return %c0_i32, %c0_i32_0 : i32, i32
  }
  func.func @transform_6(%arg0: i32, %arg1: i32) -> (i32, i32) {
    %c0_i32 = arith.constant 0 : i32
    %c0_i32_0 = arith.constant 0 : i32
    %c0_i32_1 = arith.constant 0 : i32
    return %c0_i32, %c0_i32_0 : i32, i32
  }
  func.func @transform_7(%arg0: i32, %arg1: i32) -> (i32, i32) {
    %c0_i32 = arith.constant 0 : i32
    %c0_i32_0 = arith.constant 0 : i32
    %c0_i32_1 = arith.constant 0 : i32
    return %c0_i32, %c0_i32_0 : i32, i32
  }
  func.func @transform_8(%arg0: i32, %arg1: i32) -> (i32, i32) {
    %c0_i32 = arith.constant 0 : i32
    %c0_i32_0 = arith.constant 0 : i32
    %c0_i32_1 = arith.constant 0 : i32
    return %c0_i32, %c0_i32_0 : i32, i32
  }
  func.func @transform_9(%arg0: i32, %arg1: i32) -> (i32, i32) {
    %c0_i32 = arith.constant 0 : i32
    %c0_i32_0 = arith.constant 0 : i32
    %c0_i32_1 = arith.constant 0 : i32
    return %c0_i32, %c0_i32_0 : i32, i32
  }
  func.func @transform_10(%arg0: i32, %arg1: i32) -> (i32, i32) {
    %c0_i32 = arith.constant 0 : i32
    %c0_i32_0 = arith.constant 0 : i32
    %c0_i32_1 = arith.constant 0 : i32
    return %c0_i32, %c0_i32_0 : i32, i32
  }
  func.func @transform_11(%arg0: i32, %arg1: i32) -> (i32, i32, i32) {
    %c0_i32 = arith.constant 0 : i32
    %c0_i32_0 = arith.constant 0 : i32
    return %arg0, %arg1, %c0_i32 : i32, i32, i32
  }
}

</mosaic_0001>

<llo_original>
// kernel: tpu_custom_call.1
$region0: #{tpu_custom_call.1}
  #allocation0 [shape = 'u32[]', space=smem, size = 0x4, offset = 0x4, fixed_abs, tag = 'smem constant byte address 0x4 - core index']
  #allocation1 [shape = 'u32[72,128]{1,0:T(1,128)}', space=vmem, size = 0x9000, scoped, tag = 'internal scratch']
  #allocation2 [shape = 'f32[4,16,32]{2,1,0:T(8,128)}', space=vmem, size = 0x8000, scoped, tag = 'scratch operand']
  #allocation3 [shape = 'f32[4,16,32]{2,1,0:T(8,128)}', space=vmem, size = 0x8000, scoped, tag = 'scratch operand']
  %s0 = inlined_call_operand.hbm [shape: f32[8,16,32], index: 0, kind: input, shape index: {}]
  %s1 = inlined_call_operand.hbm [shape: f32[8,16,32], index: 1, kind: input, shape index: {}]
  %s2 = inlined_call_operand.hbm [shape: f32[8,16,32], index: 2, kind: input, shape index: {}]
  %s3 = inlined_call_operand.hbm [shape: f32[32,32], index: 3, kind: input, shape index: {}]
  %s4 = inlined_call_operand.vmem [shape: f32[1,32], index: 4, kind: input, shape index: {}]
  %s5 = inlined_call_operand.hbm [shape: f32[32,32], index: 5, kind: input, shape index: {}]
  %s6 = inlined_call_operand.vmem [shape: f32[1,32], index: 6, kind: input, shape index: {}]
  %s7 = inlined_call_operand.hbm [shape: f32[32,32], index: 7, kind: input, shape index: {}]
  %s8 = inlined_call_operand.vmem [shape: f32[1,32], index: 8, kind: input, shape index: {}]
  %s9 = inlined_call_operand.hbm [shape: f32[32,32], index: 9, kind: input, shape index: {}]
  %s10 = inlined_call_operand.vmem [shape: f32[1,32], index: 10, kind: input, shape index: {}]
  %s11 = inlined_call_operand.hbm [shape: f32[8,16,32], index: 11, kind: output, shape index: {}]
  %s12 = sld [smem:[#allocation0]]
  $region109: #{tpu_custom_call.1} parent=0
    _
  %s14 = ssub.s32 1, %s12
  %s15 = scalar_select 0, %s14, %s12
  $region1: #{tpu_custom_call.1} parent=0
    #allocation4 [shape = 'u8[65536]{0}', space=vmem, size = 0x10000, scoped, tag = 'input window, operand 0']
    #allocation5 [shape = 's32[2]{0}', space=sflag, size = 0x8, scoped, tag = 'scoped memory for tpu_custom_call.1']
    #allocation6 [shape = 's32[2]{0}', space=sflag, size = 0x8, scoped, tag = 'scoped memory for tpu_custom_call.1']
    #allocation7 [shape = 'u8[65536]{0}', space=vmem, size = 0x10000, scoped, tag = 'input window, operand 1']
    #allocation8 [shape = 's32[2]{0}', space=sflag, size = 0x8, scoped, tag = 'scoped memory for tpu_custom_call.1']
    #allocation9 [shape = 'u8[65536]{0}', space=vmem, size = 0x10000, scoped, tag = 'input window, operand 2']
    #allocation10 [shape = 'u8[16384]{0}', space=vmem, size = 0x4000, scoped, tag = 'input window, operand 3, single buffered']
    #allocation11 [shape = 's32[1]{0}', space=sflag, size = 0x4, scoped, tag = 'scoped memory for tpu_custom_call.1']
    #allocation12 [shape = 'u8[16384]{0}', space=vmem, size = 0x4000, scoped, tag = 'input window, operand 5, single buffered']
    #allocation13 [shape = 'u8[16384]{0}', space=vmem, size = 0x4000, scoped, tag = 'input window, operand 7, single buffered']
    #allocation14 [shape = 's32[1]{0}', space=sflag, size = 0x4, scoped, tag = 'scoped memory for tpu_custom_call.1']
    #allocation15 [shape = 'u8[16384]{0}', space=vmem, size = 0x4000, scoped, tag = 'input window, operand 9, single buffered']
    #allocation16 [shape = 'u8[65536]{0}', space=vmem, size = 0x10000, scoped, tag = 'output window, operand 0']
    %16 = vsyncpa [#allocation5], 0
    %s17 = scalar_lea.sflag [#allocation5], 1
    %18 = vsyncpa %s17, 0
    %19 = vsyncpa [#allocation8], 0
    %s20 = scalar_lea.sflag [#allocation8], 1
    %21 = vsyncpa %s20, 0
    %22 = vsyncpa [#allocation11], 0
    %23 = vsyncpa [#allocation14], 0
    %24 = vsyncpa [#allocation6], 0
    %s25 = scalar_lea.sflag [#allocation6], 1
    %26 = vsyncpa %s25, 0
    loop: start=0, step=1, limit=4
    $region2: #{tpu_custom_call.1} parent=1 // loop_pre_header
      _
    $region3: #{tpu_custom_call.1} parent=1 // loop_header
      %s28 = sphi 0, %s32
      %p29 = scmp.ge.s32.totalorder %s28, 4
      %s35 = sphi 0, %s47
      %s36 = sphi 0, %s43
      %s37 = sphi 0, %s35
      %s38 = sphi 0, %s36
      %s39 = sphi 0, %s37
      %s40 = sphi 0, %s38
      %s52 = sphi 0, %s54
      %s55 = sphi 0, %s52
      %s56 = sphi 0, %s55
      %s72 = sphi 0, %s56
      %s78 = sphi 0, %s80
      %s81 = sphi 0, %s78
      %s82 = sphi 0, %s81
      %s98 = sphi 0, %s82
      %s104 = sphi 0, %s106
      %s107 = sphi 0, %s104
      %s108 = sphi 0, %s107
      %s124 = sphi 0, %s108
      %s128 = sphi 0, %s128
      %s130 = sphi 0, %s128
      %s131 = sphi 0, %s130
      %s145 = sphi 0, %s131
      %s149 = sphi 0, %s149
      %s151 = sphi 0, %s149
      %s152 = sphi 0, %s151
      %s166 = sphi 0, %s152
      %s170 = sphi 0, %s170
      %s172 = sphi 0, %s170
      %s173 = sphi 0, %s172
      %s187 = sphi 0, %s173
      %s191 = sphi 0, %s191
      %s193 = sphi 0, %s191
      %s194 = sphi 0, %s193
      %s208 = sphi 0, %s194
      %s212 = sphi 0, %s212
      %s214 = sphi 0, %s212
      %s215 = sphi 0, %s214
      %s229 = sphi 0, %s215
      %s233 = sphi 0, %s233
      %s235 = sphi 0, %s233
      %s236 = sphi 0, %s235
      %s250 = sphi 0, %s236
      %s254 = sphi 0, %s254
      %s256 = sphi 0, %s254
      %s257 = sphi 0, %s256
      %s271 = sphi 0, %s257
      %s275 = sphi 0, %s275
      %s277 = sphi 0, %s275
      %s278 = sphi 0, %s277
      %s292 = sphi 0, %s278
      %s300 = sphi 0, %s302
      %s303 = sphi 0, %s300
      %s304 = sphi 0, %s303
      %s320 = sphi 0, %s304
    $region4: #{tpu_custom_call.1} parent=1 // loop_header_branch
      %31 = sbr.rel (%p29) target = $region8
    $region5: #{tpu_custom_call.1} parent=1 // loop_body
      %s33 = ssub.s32 %s28, 1
      %s34 = ssub.s32 %s28, 2
      %s41 = sadd.s32 1, %s36
      %p42 = scmp.ge.s32.totalorder %s41, 1
      %s43 = scalar_select %p42, 0, %s41
      %s44 = sadd.s32 1, %s35
      %s45 = scalar_select %p42, %s44, %s35
      %p46 = scmp.ge.s32.totalorder %s45, 2
      %s47 = scalar_select %p46, 0, %s45
      %s48 = ssub.s32 %s35, %s47
      %s49 = ssub.s32 %s36, %s43
      %s50 = sor.u32 %s48, %s49
      %p51 = scmp.eq.s32.totalorder %s50, 0
      %s53 = sadd.s32 %s52, 1
      %s54 = scalar_select %p51, %s52, %s53
      %p57 = pneg %p51
      %p58 = scmp.eq.s32.totalorder %s28, 1
      %p59 = por %p57, %p58
      %p60 = scmp.ne.s32.totalorder %s52, %s55
      %p61 = scmp.eq.s32.totalorder %s28, 0
      %p62 = por %p60, %p61
      %p63 = scmp.ne.s32.totalorder %s52, %s55
      %p64 = scmp.eq.s32.totalorder %s33, 1
      %p65 = por %p63, %p64
      %p66 = scmp.ne.s32.totalorder %s55, %s56
      %p67 = scmp.eq.s32.totalorder %s33, 0
      %p68 = por %p66, %p67
      %p69 = scmp.ne.s32.totalorder %s55, %s56
      %p70 = scmp.eq.s32.totalorder %s34, 1
      %p71 = por %p69, %p70
      %p73 = scmp.ne.s32.totalorder %s56, %s72
      %p74 = scmp.eq.s32.totalorder %s34, 0
      %p75 = por %p73, %p74
      %s76 = ssub.s32 %s35, %s47
      %p77 = scmp.eq.s32.totalorder %s76, 0
      %s79 = sadd.s32 %s78, 1
      %s80 = scalar_select %p77, %s78, %s79
      %p83 = pneg %p77
      %p84 = scmp.eq.s32.totalorder %s28, 1
      %p85 = por %p83, %p84
      %p86 = scmp.ne.s32.totalorder %s78, %s81
      %p87 = scmp.eq.s32.totalorder %s28, 0
      %p88 = por %p86, %p87
      %p89 = scmp.ne.s32.totalorder %s78, %s81
      %p90 = scmp.eq.s32.totalorder %s33, 1
      %p91 = por %p89, %p90
      %p92 = scmp.ne.s32.totalorder %s81, %s82
      %p93 = scmp.eq.s32.totalorder %s33, 0
      %p94 = por %p92, %p93
      %p95 = scmp.ne.s32.totalorder %s81, %s82
      %p96 = scmp.eq.s32.totalorder %s34, 1
      %p97 = por %p95, %p96
      %p99 = scmp.ne.s32.totalorder %s82, %s98
      %p100 = scmp.eq.s32.totalorder %s34, 0
      %p101 = por %p99, %p100
      %s102 = ssub.s32 %s35, %s47
      %p103 = scmp.eq.s32.totalorder %s102, 0
      %s105 = sadd.s32 %s104, 1
      %s106 = scalar_select %p103, %s104, %s105
      %p109 = pneg %p103
      %p110 = scmp.eq.s32.totalorder %s28, 1
      %p111 = por %p109, %p110
      %p112 = scmp.ne.s32.totalorder %s104, %s107
      %p113 = scmp.eq.s32.totalorder %s28, 0
      %p114 = por %p112, %p113
      %p115 = scmp.ne.s32.totalorder %s104, %s107
      %p116 = scmp.eq.s32.totalorder %s33, 1
      %p117 = por %p115, %p116
      %p118 = scmp.ne.s32.totalorder %s107, %s108
      %p119 = scmp.eq.s32.totalorder %s33, 0
      %p120 = por %p118, %p119
      %p121 = scmp.ne.s32.totalorder %s107, %s108
      %p122 = scmp.eq.s32.totalorder %s34, 1
      %p123 = por %p121, %p122
      %p125 = scmp.ne.s32.totalorder %s108, %s124
      %p126 = scmp.eq.s32.totalorder %s34, 0
      %p127 = por %p125, %p126
      %s129 = sadd.s32 %s128, 1
      %p132 = scmp.eq.s32.totalorder %s28, 1
      %p133 = scmp.ne.s32.totalorder %s128, %s130
      %p134 = scmp.eq.s32.totalorder %s28, 0
      %p135 = por %p133, %p134
      %p136 = scmp.ne.s32.totalorder %s128, %s130
      %p137 = scmp.eq.s32.totalorder %s33, 1
      %p138 = por %p136, %p137
      %p139 = scmp.ne.s32.totalorder %s130, %s131
      %p140 = scmp.eq.s32.totalorder %s33, 0
      %p141 = por %p139, %p140
      %p142 = scmp.ne.s32.totalorder %s130, %s131
      %p143 = scmp.eq.s32.totalorder %s34, 1
      %p144 = por %p142, %p143
      %p146 = scmp.ne.s32.totalorder %s131, %s145
      %p147 = scmp.eq.s32.totalorder %s34, 0
      %p148 = por %p146, %p147
      %s150 = sadd.s32 %s149, 1
      %p153 = scmp.eq.s32.totalorder %s28, 1
      %p154 = scmp.ne.s32.totalorder %s149, %s151
      %p155 = scmp.eq.s32.totalorder %s28, 0
      %p156 = por %p154, %p155
      %p157 = scmp.ne.s32.totalorder %s149, %s151
      %p158 = scmp.eq.s32.totalorder %s33, 1
      %p159 = por %p157, %p158
      %p160 = scmp.ne.s32.totalorder %s151, %s152
      %p161 = scmp.eq.s32.totalorder %s33, 0
      %p162 = por %p160, %p161
      %p163 = scmp.ne.s32.totalorder %s151, %s152
      %p164 = scmp.eq.s32.totalorder %s34, 1
      %p165 = por %p163, %p164
      %p167 = scmp.ne.s32.totalorder %s152, %s166
      %p168 = scmp.eq.s32.totalorder %s34, 0
      %p169 = por %p167, %p168
      %s171 = sadd.s32 %s170, 1
      %p174 = scmp.eq.s32.totalorder %s28, 1
      %p175 = scmp.ne.s32.totalorder %s170, %s172
      %p176 = scmp.eq.s32.totalorder %s28, 0
      %p177 = por %p175, %p176
      %p178 = scmp.ne.s32.totalorder %s170, %s172
      %p179 = scmp.eq.s32.totalorder %s33, 1
      %p180 = por %p178, %p179
      %p181 = scmp.ne.s32.totalorder %s172, %s173
      %p182 = scmp.eq.s32.totalorder %s33, 0
      %p183 = por %p181, %p182
      %p184 = scmp.ne.s32.totalorder %s172, %s173
      %p185 = scmp.eq.s32.totalorder %s34, 1
      %p186 = por %p184, %p185
      %p188 = scmp.ne.s32.totalorder %s173, %s187
      %p189 = scmp.eq.s32.totalorder %s34, 0
      %p190 = por %p188, %p189
      %s192 = sadd.s32 %s191, 1
      %p195 = scmp.eq.s32.totalorder %s28, 1
      %p196 = scmp.ne.s32.totalorder %s191, %s193
      %p197 = scmp.eq.s32.totalorder %s28, 0
      %p198 = por %p196, %p197
      %p199 = scmp.ne.s32.totalorder %s191, %s193
      %p200 = scmp.eq.s32.totalorder %s33, 1
      %p201 = por %p199, %p200
      %p202 = scmp.ne.s32.totalorder %s193, %s194
      %p203 = scmp.eq.s32.totalorder %s33, 0
      %p204 = por %p202, %p203
      %p205 = scmp.ne.s32.totalorder %s193, %s194
      %p206 = scmp.eq.s32.totalorder %s34, 1
      %p207 = por %p205, %p206
      %p209 = scmp.ne.s32.totalorder %s194, %s208
      %p210 = scmp.eq.s32.totalorder %s34, 0
      %p211 = por %p209, %p210
      %s213 = sadd.s32 %s212, 1
      %p216 = scmp.eq.s32.totalorder %s28, 1
      %p217 = scmp.ne.s32.totalorder %s212, %s214
      %p218 = scmp.eq.s32.totalorder %s28, 0
      %p219 = por %p217, %p218
      %p220 = scmp.ne.s32.totalorder %s212, %s214
      %p221 = scmp.eq.s32.totalorder %s33, 1
      %p222 = por %p220, %p221
      %p223 = scmp.ne.s32.totalorder %s214, %s215
      %p224 = scmp.eq.s32.totalorder %s33, 0
      %p225 = por %p223, %p224
      %p226 = scmp.ne.s32.totalorder %s214, %s215
      %p227 = scmp.eq.s32.totalorder %s34, 1
      %p228 = por %p226, %p227
      %p230 = scmp.ne.s32.totalorder %s215, %s229
      %p231 = scmp.eq.s32.totalorder %s34, 0
      %p232 = por %p230, %p231
      %s234 = sadd.s32 %s233, 1
      %p237 = scmp.eq.s32.totalorder %s28, 1
      %p238 = scmp.ne.s32.totalorder %s233, %s235
      %p239 = scmp.eq.s32.totalorder %s28, 0
      %p240 = por %p238, %p239
      %p241 = scmp.ne.s32.totalorder %s233, %s235
      %p242 = scmp.eq.s32.totalorder %s33, 1
      %p243 = por %p241, %p242
      %p244 = scmp.ne.s32.totalorder %s235, %s236
      %p245 = scmp.eq.s32.totalorder %s33, 0
      %p246 = por %p244, %p245
      %p247 = scmp.ne.s32.totalorder %s235, %s236
      %p248 = scmp.eq.s32.totalorder %s34, 1
      %p249 = por %p247, %p248
      %p251 = scmp.ne.s32.totalorder %s236, %s250
      %p252 = scmp.eq.s32.totalorder %s34, 0
      %p253 = por %p251, %p252
      %s255 = sadd.s32 %s254, 1
      %p258 = scmp.eq.s32.totalorder %s28, 1
      %p259 = scmp.ne.s32.totalorder %s254, %s256
      %p260 = scmp.eq.s32.totalorder %s28, 0
      %p261 = por %p259, %p260
      %p262 = scmp.ne.s32.totalorder %s254, %s256
      %p263 = scmp.eq.s32.totalorder %s33, 1
      %p264 = por %p262, %p263
      %p265 = scmp.ne.s32.totalorder %s256, %s257
      %p266 = scmp.eq.s32.totalorder %s33, 0
      %p267 = por %p265, %p266
      %p268 = scmp.ne.s32.totalorder %s256, %s257
      %p269 = scmp.eq.s32.totalorder %s34, 1
      %p270 = por %p268, %p269
      %p272 = scmp.ne.s32.totalorder %s257, %s271
      %p273 = scmp.eq.s32.totalorder %s34, 0
      %p274 = por %p272, %p273
      %s276 = sadd.s32 %s275, 1
      %p279 = scmp.eq.s32.totalorder %s28, 1
      %p280 = scmp.ne.s32.totalorder %s275, %s277
      %p281 = scmp.eq.s32.totalorder %s28, 0
      %p282 = por %p280, %p281
      %p283 = scmp.ne.s32.totalorder %s275, %s277
      %p284 = scmp.eq.s32.totalorder %s33, 1
      %p285 = por %p283, %p284
      %p286 = scmp.ne.s32.totalorder %s277, %s278
      %p287 = scmp.eq.s32.totalorder %s33, 0
      %p288 = por %p286, %p287
      %p289 = scmp.ne.s32.totalorder %s277, %s278
      %p290 = scmp.eq.s32.totalorder %s34, 1
      %p291 = por %p289, %p290
      %p293 = scmp.ne.s32.totalorder %s278, %s292
      %p294 = scmp.eq.s32.totalorder %s34, 0
      %p295 = por %p293, %p294
      %s296 = ssub.s32 %s35, %s47
      %s297 = ssub.s32 %s36, %s43
      %s298 = sor.u32 %s296, %s297
      %p299 = scmp.eq.s32.totalorder %s298, 0
      %s301 = sadd.s32 %s300, 1
      %s302 = scalar_select %p299, %s300, %s301
      %p305 = pneg %p299
      %p306 = scmp.eq.s32.totalorder %s28, 1
      %p307 = por %p305, %p306
      %p308 = scmp.ne.s32.totalorder %s300, %s303
      %p309 = scmp.eq.s32.totalorder %s28, 0
      %p310 = por %p308, %p309
      %p311 = scmp.ne.s32.totalorder %s300, %s303
      %p312 = scmp.eq.s32.totalorder %s33, 1
      %p313 = por %p311, %p312
      %p314 = scmp.ne.s32.totalorder %s303, %s304
      %p315 = scmp.eq.s32.totalorder %s33, 0
      %p316 = por %p314, %p315
      %p317 = scmp.ne.s32.totalorder %s303, %s304
      %p318 = scmp.eq.s32.totalorder %s34, 1
      %p319 = por %p317, %p318
      %p321 = scmp.ne.s32.totalorder %s304, %s320
      %p322 = scmp.eq.s32.totalorder %s34, 0
      %p323 = por %p321, %p322
      %p324 = scmp.le.s32.totalorder 1, %s28
      %p325 = scmp.lt.s32.totalorder %s28, 3
      %p326 = pnand %p324, %p325
      %p327 = pneg %p326
      // Predicated region
      $region9: #{tpu_custom_call.1} parent=5 // pred_check
        _
      $region10: #{tpu_custom_call.1} parent=5 // pred_check_branch
        %329 = sbr.rel (%p326) target = $region12
      $region11: #{tpu_custom_call.1} parent=5 // pred_region
        %s330 = ssub.s32 %s28, 1
        // Predicated region
        $region13: #{tpu_custom_call.1} parent=11 // pred_check
          %p331 = pneg %p141
        $region14: #{tpu_custom_call.1} parent=11 // pred_check_branch
          %333 = sbr.rel (%p331) target = $region16
        $region15: #{tpu_custom_call.1} parent=11 // pred_region
          %335 = vsyncadd [#allocation11], 0
          %s336 = sshll.u32 %s3, 4
          %s337 = int_to_ptr.hbm [resolvable:$true] %s336
          %s338 = sshll.u32 [#allocation10], 4
          %s339 = int_to_ptr.vmem [resolvable:$true] %s338
          %344 = dma.hbm_to_vmem [thread:$0]  %s337, 512, %s339, [#allocation11], 128, 128, 8
        $region16: #{tpu_custom_call.1} parent=11 // pred_fallthru
          _
        // Predicated region
        $region17: #{tpu_custom_call.1} parent=11 // pred_check
          %p345 = pneg %p162
        $region18: #{tpu_custom_call.1} parent=11 // pred_check_branch
          %347 = sbr.rel (%p345) target = $region20
        $region19: #{tpu_custom_call.1} parent=11 // pred_region
          _
        $region20: #{tpu_custom_call.1} parent=11 // pred_fallthru
          _
        // Predicated region
        $region21: #{tpu_custom_call.1} parent=11 // pred_check
          %p348 = pneg %p183
        $region22: #{tpu_custom_call.1} parent=11 // pred_check_branch
          %350 = sbr.rel (%p348) target = $region24
        $region23: #{tpu_custom_call.1} parent=11 // pred_region
          %352 = vsyncadd [#allocation11], 0
          %s353 = sshll.u32 %s5, 4
          %s354 = int_to_ptr.hbm [resolvable:$true] %s353
          %s355 = sshll.u32 [#allocation12], 4
          %s356 = int_to_ptr.vmem [resolvable:$true] %s355
          %361 = dma.hbm_to_vmem [thread:$0]  %s354, 512, %s356, [#allocation11], 128, 128, 8
        $region24: #{tpu_custom_call.1} parent=11 // pred_fallthru
          _
        // Predicated region
        $region25: #{tpu_custom_call.1} parent=11 // pred_check
          %p362 = pneg %p204
        $region26: #{tpu_custom_call.1} parent=11 // pred_check_branch
          %364 = sbr.rel (%p362) target = $region28
        $region27: #{tpu_custom_call.1} parent=11 // pred_region
          _
        $region28: #{tpu_custom_call.1} parent=11 // pred_fallthru
          _
        // Predicated region
        $region29: #{tpu_custom_call.1} parent=11 // pred_check
          %p365 = pneg %p225
        $region30: #{tpu_custom_call.1} parent=11 // pred_check_branch
          %367 = sbr.rel (%p365) target = $region32
        $region31: #{tpu_custom_call.1} parent=11 // pred_region
          %369 = vsyncadd [#allocation14], 0
          %s370 = sshll.u32 %s7, 4
          %s371 = int_to_ptr.hbm [resolvable:$true] %s370
          %s372 = sshll.u32 [#allocation13], 4
          %s373 = int_to_ptr.vmem [resolvable:$true] %s372
          %378 = dma.hbm_to_vmem [thread:$0]  %s371, 512, %s373, [#allocation14], 128, 128, 8
        $region32: #{tpu_custom_call.1} parent=11 // pred_fallthru
          _
        // Predicated region
        $region33: #{tpu_custom_call.1} parent=11 // pred_check
          %p379 = pneg %p246
        $region34: #{tpu_custom_call.1} parent=11 // pred_check_branch
          %381 = sbr.rel (%p379) target = $region36
        $region35: #{tpu_custom_call.1} parent=11 // pred_region
          _
        $region36: #{tpu_custom_call.1} parent=11 // pred_fallthru
          _
        // Predicated region
        $region37: #{tpu_custom_call.1} parent=11 // pred_check
          %p382 = pneg %p267
        $region38: #{tpu_custom_call.1} parent=11 // pred_check_branch
          %384 = sbr.rel (%p382) target = $region40
        $region39: #{tpu_custom_call.1} parent=11 // pred_region
          %386 = vsyncadd [#allocation14], 0
          %s387 = sshll.u32 %s9, 4
          %s388 = int_to_ptr.hbm [resolvable:$true] %s387
          %s389 = sshll.u32 [#allocation15], 4
          %s390 = int_to_ptr.vmem [resolvable:$true] %s389
          %395 = dma.hbm_to_vmem [thread:$0]  %s388, 512, %s390, [#allocation14], 128, 128, 8
        $region40: #{tpu_custom_call.1} parent=11 // pred_fallthru
          _
        // Predicated region
        $region41: #{tpu_custom_call.1} parent=11 // pred_check
          %p396 = pneg %p288
        $region42: #{tpu_custom_call.1} parent=11 // pred_check_branch
          %398 = sbr.rel (%p396) target = $region44
        $region43: #{tpu_custom_call.1} parent=11 // pred_region
          _
        $region44: #{tpu_custom_call.1} parent=11 // pred_fallthru
          _
      $region12: #{tpu_custom_call.1} parent=5 // pred_fallthru
        _
      %p399 = scmp.lt.s32.totalorder %s28, 2
      // Predicated region
      $region45: #{tpu_custom_call.1} parent=5 // pred_check
        %p400 = pneg %p399
      $region46: #{tpu_custom_call.1} parent=5 // pred_check_branch
        %402 = sbr.rel (%p400) target = $region48
      $region47: #{tpu_custom_call.1} parent=5 // pred_region
        // Predicated region
        $region49: #{tpu_custom_call.1} parent=47 // pred_check
          %p403 = pneg %p62
        $region50: #{tpu_custom_call.1} parent=47 // pred_check_branch
          %405 = sbr.rel (%p403) target = $region52
        $region51: #{tpu_custom_call.1} parent=47 // pred_region
          %s406 = sand.u32 %s52, 1
          %s407 = scalar_lea.sflag [#allocation5], %s406
          %s408 = sand.u32 %s52, 1
          %s409 = smul.addr %s408, 64
          %s410 = scalar_lea.vmem [#allocation4], %s409
          %s411 = smul.u32 4, %s35
          %s412 = smul.u32 2, %s36
          %414 = vsyncadd %s407, 0
          %s415 = smul.addr %s411, 2
          %s416 = sadd.s32 %s412, %s415
          %s417 = smul.addr %s416, 8
          %s418 = scalar_lea.hbm %s0, %s417
          %s419 = sshll.u32 %s418, 4
          %s420 = int_to_ptr.hbm [resolvable:$true] %s419
          %s421 = sshll.u32 %s410, 4
          %s422 = int_to_ptr.vmem [resolvable:$true] %s421
          %427 = dma.hbm_to_vmem [thread:$0]  %s420, 1024, %s422, %s407, 128, 128, 8
        $region52: #{tpu_custom_call.1} parent=47 // pred_fallthru
          _
        // Predicated region
        $region53: #{tpu_custom_call.1} parent=47 // pred_check
          %p428 = pneg %p88
        $region54: #{tpu_custom_call.1} parent=47 // pred_check_branch
          %430 = sbr.rel (%p428) target = $region56
        $region55: #{tpu_custom_call.1} parent=47 // pred_region
          %s431 = sand.u32 %s28, 1
          %s432 = scalar_lea.sflag [#allocation8], %s431
          %s433 = sand.u32 %s78, 1
          %s434 = smul.addr %s433, 64
          %s435 = scalar_lea.vmem [#allocation7], %s434
          %s436 = smul.u32 4, %s35
          %438 = vsyncadd %s432, 0
          %s439 = smul.addr %s436, 2
          %s440 = smul.addr %s439, 8
          %s441 = scalar_lea.hbm %s1, %s440
          %s442 = sshll.u32 %s441, 4
          %s443 = int_to_ptr.hbm [resolvable:$true] %s442
          %s444 = sshll.u32 %s435, 4
          %s445 = int_to_ptr.vmem [resolvable:$true] %s444
          %450 = dma.hbm_to_vmem [thread:$0]  %s443, 1024, %s445, %s432, 128, 128, 8
        $region56: #{tpu_custom_call.1} parent=47 // pred_fallthru
          _
        // Predicated region
        $region57: #{tpu_custom_call.1} parent=47 // pred_check
          %p451 = pneg %p114
        $region58: #{tpu_custom_call.1} parent=47 // pred_check_branch
          %453 = sbr.rel (%p451) target = $region60
        $region59: #{tpu_custom_call.1} parent=47 // pred_region
          %s454 = sand.u32 %s28, 1
          %s455 = scalar_lea.sflag [#allocation8], %s454
          %s456 = sand.u32 %s104, 1
          %s457 = smul.addr %s456, 64
          %s458 = scalar_lea.vmem [#allocation9], %s457
          %s459 = smul.u32 4, %s35
          %461 = vsyncadd %s455, 0
          %s462 = smul.addr %s459, 2
          %s463 = smul.addr %s462, 8
          %s464 = scalar_lea.hbm %s2, %s463
          %s465 = sshll.u32 %s464, 4
          %s466 = int_to_ptr.hbm [resolvable:$true] %s465
          %s467 = sshll.u32 %s458, 4
          %s468 = int_to_ptr.vmem [resolvable:$true] %s467
          %473 = dma.hbm_to_vmem [thread:$0]  %s466, 1024, %s468, %s455, 128, 128, 8
        $region60: #{tpu_custom_call.1} parent=47 // pred_fallthru
          _
      $region48: #{tpu_custom_call.1} parent=5 // pred_fallthru
        _
      %p474 = scmp.le.s32.totalorder 1, %s28
      %p475 = scmp.lt.s32.totalorder %s28, 3
      %p476 = pnand %p474, %p475
      %p477 = pneg %p476
      // Predicated region
      $region61: #{tpu_custom_call.1} parent=5 // pred_check
        _
      $region62: #{tpu_custom_call.1} parent=5 // pred_check_branch
        %479 = sbr.rel (%p476) target = $region64
      $region63: #{tpu_custom_call.1} parent=5 // pred_region
        %s480 = ssub.s32 %s28, 1
        %s481 = sand.u32 %s55, 1
        %s482 = scalar_lea.sflag [#allocation5], %s481
        %s483 = sand.u32 %s55, 1
        %s484 = smul.addr %s483, 64
        %s485 = scalar_lea.vmem [#allocation4], %s484
        // Predicated region
        $region65: #{tpu_custom_call.1} parent=63 // pred_check
          %p486 = pneg %p68
        $region66: #{tpu_custom_call.1} parent=63 // pred_check_branch
          %488 = sbr.rel (%p486) target = $region68
        $region67: #{tpu_custom_call.1} parent=63 // pred_region
          %490 = dma.done %s482, 1024
        $region68: #{tpu_custom_call.1} parent=63 // pred_fallthru
          _
        %s491 = sand.u32 %s33, 1
        %s492 = scalar_lea.sflag [#allocation8], %s491
        %s493 = sand.u32 %s81, 1
        %s494 = smul.addr %s493, 64
        %s495 = scalar_lea.vmem [#allocation7], %s494
        // Predicated region
        $region69: #{tpu_custom_call.1} parent=63 // pred_check
          %p496 = pneg %p94
        $region70: #{tpu_custom_call.1} parent=63 // pred_check_branch
          %498 = sbr.rel (%p496) target = $region72
        $region71: #{tpu_custom_call.1} parent=63 // pred_region
          %500 = dma.done %s492, 1024
        $region72: #{tpu_custom_call.1} parent=63 // pred_fallthru
          _
        %s501 = sand.u32 %s33, 1
        %s502 = scalar_lea.sflag [#allocation8], %s501
        %s503 = sand.u32 %s107, 1
        %s504 = smul.addr %s503, 64
        %s505 = scalar_lea.vmem [#allocation9], %s504
        // Predicated region
        $region73: #{tpu_custom_call.1} parent=63 // pred_check
          %p506 = pneg %p120
        $region74: #{tpu_custom_call.1} parent=63 // pred_check_branch
          %508 = sbr.rel (%p506) target = $region76
        $region75: #{tpu_custom_call.1} parent=63 // pred_region
          %510 = dma.done %s502, 1024
        $region76: #{tpu_custom_call.1} parent=63 // pred_fallthru
          _
        // Predicated region
        $region77: #{tpu_custom_call.1} parent=63 // pred_check
          %p511 = pneg %p141
        $region78: #{tpu_custom_call.1} parent=63 // pred_check_branch
          %513 = sbr.rel (%p511) target = $region80
        $region79: #{tpu_custom_call.1} parent=63 // pred_region
          %515 = dma.done [#allocation11], 512
        $region80: #{tpu_custom_call.1} parent=63 // pred_fallthru
          _
        // Predicated region
        $region81: #{tpu_custom_call.1} parent=63 // pred_check
          %p516 = pneg %p183
        $region82: #{tpu_custom_call.1} parent=63 // pred_check_branch
          %518 = sbr.rel (%p516) target = $region84
        $region83: #{tpu_custom_call.1} parent=63 // pred_region
          %520 = dma.done [#allocation11], 512
        $region84: #{tpu_custom_call.1} parent=63 // pred_fallthru
          _
        // Predicated region
        $region85: #{tpu_custom_call.1} parent=63 // pred_check
          %p521 = pneg %p225
        $region86: #{tpu_custom_call.1} parent=63 // pred_check_branch
          %523 = sbr.rel (%p521) target = $region88
        $region87: #{tpu_custom_call.1} parent=63 // pred_region
          %525 = dma.done [#allocation14], 512
        $region88: #{tpu_custom_call.1} parent=63 // pred_fallthru
          _
        // Predicated region
        $region89: #{tpu_custom_call.1} parent=63 // pred_check
          %p526 = pneg %p267
        $region90: #{tpu_custom_call.1} parent=63 // pred_check_branch
          %528 = sbr.rel (%p526) target = $region92
        $region91: #{tpu_custom_call.1} parent=63 // pred_region
          %530 = dma.done [#allocation14], 512
        $region92: #{tpu_custom_call.1} parent=63 // pred_fallthru
          _
        %s531 = sand.u32 %s55, 1
        %s532 = scalar_lea.sflag [#allocation5], %s531
        %s533 = sand.u32 %s55, 1
        %s534 = smul.addr %s533, 64
        %s535 = scalar_lea.vmem [#allocation4], %s534
        %p536 = pneg %p68
        %p537 = pneg %p65
        %s538 = sand.u32 %s33, 1
        %s539 = scalar_lea.sflag [#allocation8], %s538
        %s540 = sand.u32 %s81, 1
        %s541 = smul.addr %s540, 64
        %s542 = scalar_lea.vmem [#allocation7], %s541
        %p543 = pneg %p94
        %p544 = pneg %p91
        %s545 = sand.u32 %s33, 1
        %s546 = scalar_lea.sflag [#allocation8], %s545
        %s547 = sand.u32 %s107, 1
        %s548 = smul.addr %s547, 64
        %s549 = scalar_lea.vmem [#allocation9], %s548
        %p550 = pneg %p120
        %p551 = pneg %p117
        %p552 = pneg %p141
        %p553 = pneg %p138
        %p554 = pneg %p162
        %p555 = pneg %p159
        %p556 = pneg %p183
        %p557 = pneg %p180
        %p558 = pneg %p204
        %p559 = pneg %p201
        %p560 = pneg %p225
        %p561 = pneg %p222
        %p562 = pneg %p246
        %p563 = pneg %p243
        %p564 = pneg %p267
        %p565 = pneg %p264
        %p566 = pneg %p288
        %p567 = pneg %p285
        %p568 = pneg %p316
        %p569 = pneg %p313
        %s570 = sand.u32 %s303, 1
        %s571 = scalar_lea.sflag [#allocation6], %s570
        %s572 = sand.u32 %s303, 1
        %s573 = smul.addr %s572, 64
        %s574 = scalar_lea.vmem [#allocation16], %s573
        %s575 = smul.u32 4, %s37
        %s576 = smul.u32 2, %s38
        %s577 = smul.u32 4, %s37
        %s578 = smul.u32 4, %s37
        %s579 = smul.u32 4, %s37
        %s580 = smul.u32 2, %s38
        %p581 = scmp.eq.s32.totalorder %s38, 0
        // Predicated region
        $region93: #{tpu_custom_call.1} parent=63 // pred_check
          %p582 = pneg %p581
        $region94: #{tpu_custom_call.1} parent=63 // pred_check_branch
          %584 = sbr.rel (%p582) target = $region96
        $region95: #{tpu_custom_call.1} parent=63 // pred_region
          %v585 = vld [vmem:[%s495] sm:$0xff]
          %v586 = vld [vmem:[%s495 + $0x8] sm:$0xff]
          %v587 = vld [vmem:[%s495 + $0x10] sm:$0xff]
          %v588 = vld [vmem:[%s495 + $0x18] sm:$0xff]
          %v589 = vld [vmem:[%s495 + $0x20] sm:$0xff]
          %v590 = vld [vmem:[%s495 + $0x28] sm:$0xff]
          %v591 = vld [vmem:[%s495 + $0x30] sm:$0xff]
          %v592 = vld [vmem:[%s495 + $0x38] sm:$0xff]
          %v593 = vld [vmem:[#allocation12] sm:$0xff]
          %v594 = vld [vmem:[#allocation12 + $0x8] sm:$0xff]
          %v595 = vld [vmem:[#allocation12 + $0x10] sm:$0xff]
          %v596 = vld [vmem:[#allocation12 + $0x18] sm:$0xff]
          %v597 = vld [vmem:[%s6] sm:$0x1]
          %v599 = vperm.slane %v597, 0
          %vm601 = vcmask 261120
          %v603 = vsel %vm601, %v585, 0
          %v606 = vsel %vm601, %v586, 0
          %v609 = vsel %vm601, %v587, 0
          %v612 = vsel %vm601, %v588, 0
          %v615 = vsel %vm601, %v589, 0
          %v618 = vsel %vm601, %v590, 0
          %v621 = vsel %vm601, %v591, 0
          %v624 = vsel %vm601, %v592, 0
          %626 = vmatpush.msra.mxu0 0.0
          %627 = vmatpush.msra.mxu0 0.0
          %628 = vmatpush.msra.mxu0 0.0
          %629 = vmatpush.msra.mxu0 0.0
          %630 = vmatpush.msra.mxu0 0.0
          %631 = vmatpush.msra.mxu0 0.0
          %632 = vmatpush.msra.mxu0 0.0
          %633 = vmatpush.msra.mxu0 0.0
          %634 = vmatpush.msra.mxu0 0.0
          %635 = vmatpush.msra.mxu0 0.0
          %636 = vmatpush.msra.mxu0 0.0
          %637 = vmatpush.msra.mxu0 0.0
          %638 = vmatpush.msra.mxu0 %v596
          %639 = vmatpush.msra.mxu0 %v595
          %640 = vmatpush.msra.mxu0 %v594
          %641 = vmatpush.msra.mxu0 %v593
          %642 = vmatmul.f32.gmra.mxu0 %v603
          %v643 = vpop.f32.mrf.mxu0
          %v644 = vadd.f32 %v599, %v643
          %645 = vmatmul.f32.gmra.mxu0 %v606
          %v646 = vpop.f32.mrf.mxu0
          %v647 = vadd.f32 %v599, %v646
          %648 = vmatmul.f32.gmra.mxu0 %v609
          %v649 = vpop.f32.mrf.mxu0
          %v650 = vadd.f32 %v599, %v649
          %651 = vmatmul.f32.gmra.mxu0 %v612
          %v652 = vpop.f32.mrf.mxu0
          %v653 = vadd.f32 %v599, %v652
          %654 = vmatmul.f32.gmra.mxu0 %v615
          %v655 = vpop.f32.mrf.mxu0
          %v656 = vadd.f32 %v599, %v655
          %657 = vmatmul.f32.gmra.mxu0 %v618
          %v658 = vpop.f32.mrf.mxu0
          %v659 = vadd.f32 %v599, %v658
          %660 = vmatmul.f32.gmra.mxu0 %v621
          %v661 = vpop.f32.mrf.mxu0
          %v662 = vadd.f32 %v599, %v661
          %663 = vmatmul.f32.gmra.mxu0 %v624
          %v664 = vpop.f32.mrf.mxu0
          %v665 = vadd.f32 %v599, %v664
          %666 = vdwg.mxu0
          %667 = vst.msk [vmem:[#allocation2] sm:$0xff] %vm601, %v644
          %668 = vst.msk [vmem:[#allocation2 + $0x8] sm:$0xff] %vm601, %v647
          %669 = vst.msk [vmem:[#allocation2 + $0x10] sm:$0xff] %vm601, %v650
          %670 = vst.msk [vmem:[#allocation2 + $0x18] sm:$0xff] %vm601, %v653
          %671 = vst.msk [vmem:[#allocation2 + $0x20] sm:$0xff] %vm601, %v656
          %672 = vst.msk [vmem:[#allocation2 + $0x28] sm:$0xff] %vm601, %v659
          %673 = vst.msk [vmem:[#allocation2 + $0x30] sm:$0xff] %vm601, %v662
          %674 = vst.msk [vmem:[#allocation2 + $0x38] sm:$0xff] %vm601, %v665
          %v675 = vld [vmem:[%s505] sm:$0xff]
          %v676 = vld [vmem:[%s505 + $0x8] sm:$0xff]
          %v677 = vld [vmem:[%s505 + $0x10] sm:$0xff]
          %v678 = vld [vmem:[%s505 + $0x18] sm:$0xff]
          %v679 = vld [vmem:[%s505 + $0x20] sm:$0xff]
          %v680 = vld [vmem:[%s505 + $0x28] sm:$0xff]
          %v681 = vld [vmem:[%s505 + $0x30] sm:$0xff]
          %v682 = vld [vmem:[%s505 + $0x38] sm:$0xff]
          %v683 = vld [vmem:[#allocation13] sm:$0xff]
          %v684 = vld [vmem:[#allocation13 + $0x8] sm:$0xff]
          %v685 = vld [vmem:[#allocation13 + $0x10] sm:$0xff]
          %v686 = vld [vmem:[#allocation13 + $0x18] sm:$0xff]
          %v687 = vld [vmem:[%s8] sm:$0x1]
          %v689 = vperm.slane %v687, 0
          %v692 = vsel %vm601, %v675, 0
          %v695 = vsel %vm601, %v676, 0
          %v698 = vsel %vm601, %v677, 0
          %v701 = vsel %vm601, %v678, 0
          %v704 = vsel %vm601, %v679, 0
          %v707 = vsel %vm601, %v680, 0
          %v710 = vsel %vm601, %v681, 0
          %v713 = vsel %vm601, %v682, 0
          %715 = vmatpush.msra.mxu0 0.0
          %716 = vmatpush.msra.mxu0 0.0
          %717 = vmatpush.msra.mxu0 0.0
          %718 = vmatpush.msra.mxu0 0.0
          %719 = vmatpush.msra.mxu0 0.0
          %720 = vmatpush.msra.mxu0 0.0
          %721 = vmatpush.msra.mxu0 0.0
          %722 = vmatpush.msra.mxu0 0.0
          %723 = vmatpush.msra.mxu0 0.0
          %724 = vmatpush.msra.mxu0 0.0
          %725 = vmatpush.msra.mxu0 0.0
          %726 = vmatpush.msra.mxu0 0.0
          %727 = vmatpush.msra.mxu0 %v686
          %728 = vmatpush.msra.mxu0 %v685
          %729 = vmatpush.msra.mxu0 %v684
          %730 = vmatpush.msra.mxu0 %v683
          %731 = vmatmul.f32.gmra.mxu0 %v692
          %v732 = vpop.f32.mrf.mxu0
          %v733 = vadd.f32 %v689, %v732
          %734 = vmatmul.f32.gmra.mxu0 %v695
          %v735 = vpop.f32.mrf.mxu0
          %v736 = vadd.f32 %v689, %v735
          %737 = vmatmul.f32.gmra.mxu0 %v698
          %v738 = vpop.f32.mrf.mxu0
          %v739 = vadd.f32 %v689, %v738
          %740 = vmatmul.f32.gmra.mxu0 %v701
          %v741 = vpop.f32.mrf.mxu0
          %v742 = vadd.f32 %v689, %v741
          %743 = vmatmul.f32.gmra.mxu0 %v704
          %v744 = vpop.f32.mrf.mxu0
          %v745 = vadd.f32 %v689, %v744
          %746 = vmatmul.f32.gmra.mxu0 %v707
          %v747 = vpop.f32.mrf.mxu0
          %v748 = vadd.f32 %v689, %v747
          %749 = vmatmul.f32.gmra.mxu0 %v710
          %v750 = vpop.f32.mrf.mxu0
          %v751 = vadd.f32 %v689, %v750
          %752 = vmatmul.f32.gmra.mxu0 %v713
          %v753 = vpop.f32.mrf.mxu0
          %v754 = vadd.f32 %v689, %v753
          %755 = vdwg.mxu0
          %756 = vst.msk [vmem:[#allocation3] sm:$0xff] %vm601, %v733
          %757 = vst.msk [vmem:[#allocation3 + $0x8] sm:$0xff] %vm601, %v736
          %758 = vst.msk [vmem:[#allocation3 + $0x10] sm:$0xff] %vm601, %v739
          %759 = vst.msk [vmem:[#allocation3 + $0x18] sm:$0xff] %vm601, %v742
          %760 = vst.msk [vmem:[#allocation3 + $0x20] sm:$0xff] %vm601, %v745
          %761 = vst.msk [vmem:[#allocation3 + $0x28] sm:$0xff] %vm601, %v748
          %762 = vst.msk [vmem:[#allocation3 + $0x30] sm:$0xff] %vm601, %v751
          %763 = vst.msk [vmem:[#allocation3 + $0x38] sm:$0xff] %vm601, %v754
        $region96: #{tpu_custom_call.1} parent=63 // pred_fallthru
          _
        %v764 = vld [vmem:[%s485] sm:$0xff]
        %v765 = vld [vmem:[%s485 + $0x8] sm:$0xff]
        %v766 = vld [vmem:[%s485 + $0x10] sm:$0xff]
        %v767 = vld [vmem:[%s485 + $0x18] sm:$0xff]
        %v768 = vld [vmem:[%s485 + $0x20] sm:$0xff]
        %v769 = vld [vmem:[%s485 + $0x28] sm:$0xff]
        %v770 = vld [vmem:[%s485 + $0x30] sm:$0xff]
        %v771 = vld [vmem:[%s485 + $0x38] sm:$0xff]
        %v772 = vld [vmem:[#allocation10] sm:$0xff]
        %v773 = vld [vmem:[#allocation10 + $0x8] sm:$0xff]
        %v774 = vld [vmem:[#allocation10 + $0x10] sm:$0xff]
        %v775 = vld [vmem:[#allocation10 + $0x18] sm:$0xff]
        %v776 = vld [vmem:[%s4] sm:$0x1]
        %v778 = vperm.slane %v776, 0
        %vm780 = vcmask 261120
        %v782 = vsel %vm780, %v764, 0
        %v785 = vsel %vm780, %v765, 0
        %v788 = vsel %vm780, %v766, 0
        %v791 = vsel %vm780, %v767, 0
        %v794 = vsel %vm780, %v768, 0
        %v797 = vsel %vm780, %v769, 0
        %v800 = vsel %vm780, %v770, 0
        %v803 = vsel %vm780, %v771, 0
        %805 = vmatpush.msra.mxu0 0.0
        %806 = vmatpush.msra.mxu0 0.0
        %807 = vmatpush.msra.mxu0 0.0
        %808 = vmatpush.msra.mxu0 0.0
        %809 = vmatpush.msra.mxu0 0.0
        %810 = vmatpush.msra.mxu0 0.0
        %811 = vmatpush.msra.mxu0 0.0
        %812 = vmatpush.msra.mxu0 0.0
        %813 = vmatpush.msra.mxu0 0.0
        %814 = vmatpush.msra.mxu0 0.0
        %815 = vmatpush.msra.mxu0 0.0
        %816 = vmatpush.msra.mxu0 0.0
        %817 = vmatpush.msra.mxu0 %v775
        %818 = vmatpush.msra.mxu0 %v774
        %819 = vmatpush.msra.mxu0 %v773
        %820 = vmatpush.msra.mxu0 %v772
        %821 = vmatmul.f32.gmra.mxu0 %v782
        %v822 = vpop.f32.mrf.mxu0
        %v823 = vadd.f32 %v778, %v822
        %824 = vmatmul.f32.gmra.mxu0 %v785
        %v825 = vpop.f32.mrf.mxu0
        %v826 = vadd.f32 %v778, %v825
        %827 = vmatmul.f32.gmra.mxu0 %v788
        %v828 = vpop.f32.mrf.mxu0
        %v829 = vadd.f32 %v778, %v828
        %830 = vmatmul.f32.gmra.mxu0 %v791
        %v831 = vpop.f32.mrf.mxu0
        %v832 = vadd.f32 %v778, %v831
        %833 = vmatmul.f32.gmra.mxu0 %v794
        %v834 = vpop.f32.mrf.mxu0
        %v835 = vadd.f32 %v778, %v834
        %836 = vmatmul.f32.gmra.mxu0 %v797
        %v837 = vpop.f32.mrf.mxu0
        %v838 = vadd.f32 %v778, %v837
        %839 = vmatmul.f32.gmra.mxu0 %v800
        %v840 = vpop.f32.mrf.mxu0
        %v841 = vadd.f32 %v778, %v840
        %842 = vmatmul.f32.gmra.mxu0 %v803
        %v843 = vpop.f32.mrf.mxu0
        %v844 = vadd.f32 %v778, %v843
        %845 = vdwg.mxu0
        %v846 = vmul.f32 %v823, 0.35355338
        %v847 = vmul.f32 %v826, 0.35355338
        %v848 = vmul.f32 %v829, 0.35355338
        %v849 = vmul.f32 %v832, 0.35355338
        %v850 = vmul.f32 %v835, 0.35355338
        %v851 = vmul.f32 %v838, 0.35355338
        %v852 = vmul.f32 %v841, 0.35355338
        %v853 = vmul.f32 %v844, 0.35355338
        %v854 = vld [vmem:[#allocation2] sm:$0xff]
        %v855 = vld [vmem:[#allocation2 + $0x8] sm:$0xff]
        %v856 = vld [vmem:[#allocation2 + $0x10] sm:$0xff]
        %v857 = vld [vmem:[#allocation2 + $0x18] sm:$0xff]
        %v858 = vld [vmem:[#allocation2 + $0x20] sm:$0xff]
        %v859 = vld [vmem:[#allocation2 + $0x28] sm:$0xff]
        %v860 = vld [vmem:[#allocation2 + $0x30] sm:$0xff]
        %v861 = vld [vmem:[#allocation2 + $0x38] sm:$0xff]
        %v862 = vld [vmem:[#allocation3] sm:$0xff]
        %v863 = vld [vmem:[#allocation3 + $0x8] sm:$0xff]
        %v864 = vld [vmem:[#allocation3 + $0x10] sm:$0xff]
        %v865 = vld [vmem:[#allocation3 + $0x18] sm:$0xff]
        %v866 = vld [vmem:[#allocation3 + $0x20] sm:$0xff]
        %v867 = vld [vmem:[#allocation3 + $0x28] sm:$0xff]
        %v868 = vld [vmem:[#allocation3 + $0x30] sm:$0xff]
        %v869 = vld [vmem:[#allocation3 + $0x38] sm:$0xff]
        %vm870 = vcmask 64512
        %v872 = vsel %vm870, %v846, 0
        %v875 = vsel %vm870, %v847, 0
        %v878 = vsel %vm870, %v854, 0
        %v881 = vsel %vm870, %v855, 0
        %883 = vmatpush.xpose.msra.mxu0 0.0
        %884 = vmatpush.xpose.msra.mxu0 0.0
        %885 = vmatpush.xpose.msra.mxu0 0.0
        %886 = vmatpush.xpose.msra.mxu0 0.0
        %887 = vmatpush.xpose.msra.mxu0 0.0
        %888 = vmatpush.xpose.msra.mxu0 0.0
        %889 = vmatpush.xpose.msra.mxu0 0.0
        %890 = vmatpush.xpose.msra.mxu0 0.0
        %891 = vmatpush.xpose.msra.mxu0 0.0
        %892 = vmatpush.xpose.msra.mxu0 0.0
        %893 = vmatpush.xpose.msra.mxu0 0.0
        %894 = vmatpush.xpose.msra.mxu0 0.0
        %895 = vmatpush.xpose.msra.mxu0 0.0
        %896 = vmatpush.xpose.msra.mxu0 0.0
        %897 = vmatpush.xpose.msra.mxu0 %v881
        %898 = vmatpush.xpose.msra.mxu0 %v878
        %899 = vmatmul.f32.gmra.mxu0 %v872
        %v900 = vpop.f32.mrf.mxu0
        %v901 = vadd.f32 0.0, %v900
        %902 = vmatmul.f32.gmra.mxu0 %v875
        %v903 = vpop.f32.mrf.mxu0
        %v904 = vadd.f32 0.0, %v903
        %905 = vdwg.mxu0
        %v907 = vsel %vm870, %v848, 0
        %v910 = vsel %vm870, %v849, 0
        %v913 = vsel %vm870, %v856, 0
        %v916 = vsel %vm870, %v857, 0
        %918 = vmatpush.xpose.msra.mxu0 0.0
        %919 = vmatpush.xpose.msra.mxu0 0.0
        %920 = vmatpush.xpose.msra.mxu0 0.0
        %921 = vmatpush.xpose.msra.mxu0 0.0
        %922 = vmatpush.xpose.msra.mxu0 0.0
        %923 = vmatpush.xpose.msra.mxu0 0.0
        %924 = vmatpush.xpose.msra.mxu0 0.0
        %925 = vmatpush.xpose.msra.mxu0 0.0
        %926 = vmatpush.xpose.msra.mxu0 0.0
        %927 = vmatpush.xpose.msra.mxu0 0.0
        %928 = vmatpush.xpose.msra.mxu0 0.0
        %929 = vmatpush.xpose.msra.mxu0 0.0
        %930 = vmatpush.xpose.msra.mxu0 0.0
        %931 = vmatpush.xpose.msra.mxu0 0.0
        %932 = vmatpush.xpose.msra.mxu0 %v916
        %933 = vmatpush.xpose.msra.mxu0 %v913
        %934 = vmatmul.f32.gmra.mxu0 %v907
        %v935 = vpop.f32.mrf.mxu0
        %v936 = vadd.f32 0.0, %v935
        %937 = vmatmul.f32.gmra.mxu0 %v910
        %v938 = vpop.f32.mrf.mxu0
        %v939 = vadd.f32 0.0, %v938
        %940 = vdwg.mxu0
        %v942 = vsel %vm870, %v850, 0
        %v945 = vsel %vm870, %v851, 0
        %v948 = vsel %vm870, %v858, 0
        %v951 = vsel %vm870, %v859, 0
        %953 = vmatpush.xpose.msra.mxu0 0.0
        %954 = vmatpush.xpose.msra.mxu0 0.0
        %955 = vmatpush.xpose.msra.mxu0 0.0
        %956 = vmatpush.xpose.msra.mxu0 0.0
        %957 = vmatpush.xpose.msra.mxu0 0.0
        %958 = vmatpush.xpose.msra.mxu0 0.0
        %959 = vmatpush.xpose.msra.mxu0 0.0
        %960 = vmatpush.xpose.msra.mxu0 0.0
        %961 = vmatpush.xpose.msra.mxu0 0.0
        %962 = vmatpush.xpose.msra.mxu0 0.0
        %963 = vmatpush.xpose.msra.mxu0 0.0
        %964 = vmatpush.xpose.msra.mxu0 0.0
        %965 = vmatpush.xpose.msra.mxu0 0.0
        %966 = vmatpush.xpose.msra.mxu0 0.0
        %967 = vmatpush.xpose.msra.mxu0 %v951
        %968 = vmatpush.xpose.msra.mxu0 %v948
        %969 = vmatmul.f32.gmra.mxu0 %v942
        %v970 = vpop.f32.mrf.mxu0
        %v971 = vadd.f32 0.0, %v970
        %972 = vmatmul.f32.gmra.mxu0 %v945
        %v973 = vpop.f32.mrf.mxu0
        %v974 = vadd.f32 0.0, %v973
        %975 = vdwg.mxu0
        %v977 = vsel %vm870, %v852, 0
        %v980 = vsel %vm870, %v853, 0
        %v983 = vsel %vm870, %v860, 0
        %v986 = vsel %vm870, %v861, 0
        %988 = vmatpush.xpose.msra.mxu0 0.0
        %989 = vmatpush.xpose.msra.mxu0 0.0
        %990 = vmatpush.xpose.msra.mxu0 0.0
        %991 = vmatpush.xpose.msra.mxu0 0.0
        %992 = vmatpush.xpose.msra.mxu0 0.0
        %993 = vmatpush.xpose.msra.mxu0 0.0
        %994 = vmatpush.xpose.msra.mxu0 0.0
        %995 = vmatpush.xpose.msra.mxu0 0.0
        %996 = vmatpush.xpose.msra.mxu0 0.0
        %997 = vmatpush.xpose.msra.mxu0 0.0
        %998 = vmatpush.xpose.msra.mxu0 0.0
        %999 = vmatpush.xpose.msra.mxu0 0.0
        %1000 = vmatpush.xpose.msra.mxu0 0.0
        %1001 = vmatpush.xpose.msra.mxu0 0.0
        %1002 = vmatpush.xpose.msra.mxu0 %v986
        %1003 = vmatpush.xpose.msra.mxu0 %v983
        %1004 = vmatmul.f32.gmra.mxu0 %v977
        %v1005 = vpop.f32.mrf.mxu0
        %v1006 = vadd.f32 0.0, %v1005
        %1007 = vmatmul.f32.gmra.mxu0 %v980
        %v1008 = vpop.f32.mrf.mxu0
        %v1009 = vadd.f32 0.0, %v1008
        %1010 = vdwg.mxu0
        %vm1011 = vcmask 130048
        %v1012 = vsel %vm1011, %v901, -inf
        %1013 = vmax.xlane.f32.xlu0 %v1012
        %v1014 = vpop.xlane.xlu0 %1013
        %v1015 = vsel %vm1011, %v904, -inf
        %1016 = vmax.xlane.f32.xlu0 %v1015
        %v1017 = vpop.xlane.xlu0 %1016
        %v1018 = vsel %vm1011, %v936, -inf
        %1019 = vmax.xlane.f32.xlu0 %v1018
        %v1020 = vpop.xlane.xlu0 %1019
        %v1021 = vsel %vm1011, %v939, -inf
        %1022 = vmax.xlane.f32.xlu0 %v1021
        %v1023 = vpop.xlane.xlu0 %1022
        %v1024 = vsel %vm1011, %v971, -inf
        %1025 = vmax.xlane.f32.xlu0 %v1024
        %v1026 = vpop.xlane.xlu0 %1025
        %v1027 = vsel %vm1011, %v974, -inf
        %1028 = vmax.xlane.f32.xlu0 %v1027
        %v1029 = vpop.xlane.xlu0 %1028
        %v1030 = vsel %vm1011, %v1006, -inf
        %1031 = vmax.xlane.f32.xlu0 %v1030
        %v1032 = vpop.xlane.xlu0 %1031
        %v1033 = vsel %vm1011, %v1009, -inf
        %1034 = vmax.xlane.f32.xlu0 %v1033
        %v1035 = vpop.xlane.xlu0 %1034
        %v1036 = vsub.f32 %v901, %v1014
        %v1037 = vsub.f32 %v904, %v1017
        %v1038 = vsub.f32 %v936, %v1020
        %v1039 = vsub.f32 %v939, %v1023
        %v1040 = vsub.f32 %v971, %v1026
        %v1041 = vsub.f32 %v974, %v1029
        %v1042 = vsub.f32 %v1006, %v1032
        %v1043 = vsub.f32 %v1009, %v1035
        %v1044 = vmul.f32 %v1036, 1.442695
        %v1045 = vpow.pop %v1044
        %v1046 = vmul.f32 %v1037, 1.442695
        %v1047 = vpow.pop %v1046
        %v1048 = vmul.f32 %v1038, 1.442695
        %v1049 = vpow.pop %v1048
        %v1050 = vmul.f32 %v1039, 1.442695
        %v1051 = vpow.pop %v1050
        %v1052 = vmul.f32 %v1040, 1.442695
        %v1053 = vpow.pop %v1052
        %v1054 = vmul.f32 %v1041, 1.442695
        %v1055 = vpow.pop %v1054
        %v1056 = vmul.f32 %v1042, 1.442695
        %v1057 = vpow.pop %v1056
        %v1058 = vmul.f32 %v1043, 1.442695
        %v1059 = vpow.pop %v1058
        %v1060 = vsel %vm1011, %v1045, 0.0
        %1061 = vadd.xlane.f32.xlu0 %v1060
        %v1062 = vpop.xlane.xlu0 %1061
        %v1063 = vsel %vm1011, %v1047, 0.0
        %1064 = vadd.xlane.f32.xlu0 %v1063
        %v1065 = vpop.xlane.xlu0 %1064
        %v1066 = vsel %vm1011, %v1049, 0.0
        %1067 = vadd.xlane.f32.xlu0 %v1066
        %v1068 = vpop.xlane.xlu0 %1067
        %v1069 = vsel %vm1011, %v1051, 0.0
        %1070 = vadd.xlane.f32.xlu0 %v1069
        %v1071 = vpop.xlane.xlu0 %1070
        %v1072 = vsel %vm1011, %v1053, 0.0
        %1073 = vadd.xlane.f32.xlu0 %v1072
        %v1074 = vpop.xlane.xlu0 %1073
        %v1075 = vsel %vm1011, %v1055, 0.0
        %1076 = vadd.xlane.f32.xlu0 %v1075
        %v1077 = vpop.xlane.xlu0 %1076
        %v1078 = vsel %vm1011, %v1057, 0.0
        %1079 = vadd.xlane.f32.xlu0 %v1078
        %v1080 = vpop.xlane.xlu0 %1079
        %v1081 = vsel %vm1011, %v1059, 0.0
        %1082 = vadd.xlane.f32.xlu0 %v1081
        %v1083 = vpop.xlane.xlu0 %1082
        %v1084 = vrcp.pop %v1062
        %v1085 = vrcp.pop %v1065
        %v1086 = vrcp.pop %v1068
        %v1087 = vrcp.pop %v1071
        %v1088 = vrcp.pop %v1074
        %v1089 = vrcp.pop %v1077
        %v1090 = vrcp.pop %v1080
        %v1091 = vrcp.pop %v1083
        %v1092 = vmul.f32 %v1045, %v1084
        %v1093 = vmul.f32 %v1047, %v1085
        %v1094 = vmul.f32 %v1049, %v1086
        %v1095 = vmul.f32 %v1051, %v1087
        %v1096 = vmul.f32 %v1053, %v1088
        %v1097 = vmul.f32 %v1055, %v1089
        %v1098 = vmul.f32 %v1057, %v1090
        %v1099 = vmul.f32 %v1059, %v1091
        %v1101 = vsel %vm1011, %v1092, 0
        %v1104 = vsel %vm1011, %v1093, 0
        %1106 = vmatpush.msra.mxu0 0.0
        %1107 = vmatpush.msra.mxu0 0.0
        %1108 = vmatpush.msra.mxu0 0.0
        %1109 = vmatpush.msra.mxu0 0.0
        %1110 = vmatpush.msra.mxu0 0.0
        %1111 = vmatpush.msra.mxu0 0.0
        %1112 = vmatpush.msra.mxu0 0.0
        %1113 = vmatpush.msra.mxu0 0.0
        %1114 = vmatpush.msra.mxu0 0.0
        %1115 = vmatpush.msra.mxu0 0.0
        %1116 = vmatpush.msra.mxu0 0.0
        %1117 = vmatpush.msra.mxu0 0.0
        %1118 = vmatpush.msra.mxu0 0.0
        %1119 = vmatpush.msra.mxu0 0.0
        %1120 = vmatpush.msra.mxu0 %v863
        %1121 = vmatpush.msra.mxu0 %v862
        %1122 = vmatmul.f32.gmra.mxu0 %v1101
        %v1123 = vpop.f32.mrf.mxu0
        %v1124 = vadd.f32 0.0, %v1123
        %1125 = vmatmul.f32.gmra.mxu0 %v1104
        %v1126 = vpop.f32.mrf.mxu0
        %v1127 = vadd.f32 0.0, %v1126
        %1128 = vdwg.mxu0
        %v1130 = vsel %vm1011, %v1094, 0
        %v1133 = vsel %vm1011, %v1095, 0
        %1135 = vmatpush.msra.mxu0 0.0
        %1136 = vmatpush.msra.mxu0 0.0
        %1137 = vmatpush.msra.mxu0 0.0
        %1138 = vmatpush.msra.mxu0 0.0
        %1139 = vmatpush.msra.mxu0 0.0
        %1140 = vmatpush.msra.mxu0 0.0
        %1141 = vmatpush.msra.mxu0 0.0
        %1142 = vmatpush.msra.mxu0 0.0
        %1143 = vmatpush.msra.mxu0 0.0
        %1144 = vmatpush.msra.mxu0 0.0
        %1145 = vmatpush.msra.mxu0 0.0
        %1146 = vmatpush.msra.mxu0 0.0
        %1147 = vmatpush.msra.mxu0 0.0
        %1148 = vmatpush.msra.mxu0 0.0
        %1149 = vmatpush.msra.mxu0 %v865
        %1150 = vmatpush.msra.mxu0 %v864
        %1151 = vmatmul.f32.gmra.mxu0 %v1130
        %v1152 = vpop.f32.mrf.mxu0
        %v1153 = vadd.f32 0.0, %v1152
        %1154 = vmatmul.f32.gmra.mxu0 %v1133
        %v1155 = vpop.f32.mrf.mxu0
        %v1156 = vadd.f32 0.0, %v1155
        %1157 = vdwg.mxu0
        %v1159 = vsel %vm1011, %v1096, 0
        %v1162 = vsel %vm1011, %v1097, 0
        %1164 = vmatpush.msra.mxu0 0.0
        %1165 = vmatpush.msra.mxu0 0.0
        %1166 = vmatpush.msra.mxu0 0.0
        %1167 = vmatpush.msra.mxu0 0.0
        %1168 = vmatpush.msra.mxu0 0.0
        %1169 = vmatpush.msra.mxu0 0.0
        %1170 = vmatpush.msra.mxu0 0.0
        %1171 = vmatpush.msra.mxu0 0.0
        %1172 = vmatpush.msra.mxu0 0.0
        %1173 = vmatpush.msra.mxu0 0.0
        %1174 = vmatpush.msra.mxu0 0.0
        %1175 = vmatpush.msra.mxu0 0.0
        %1176 = vmatpush.msra.mxu0 0.0
        %1177 = vmatpush.msra.mxu0 0.0
        %1178 = vmatpush.msra.mxu0 %v867
        %1179 = vmatpush.msra.mxu0 %v866
        %1180 = vmatmul.f32.gmra.mxu0 %v1159
        %v1181 = vpop.f32.mrf.mxu0
        %v1182 = vadd.f32 0.0, %v1181
        %1183 = vmatmul.f32.gmra.mxu0 %v1162
        %v1184 = vpop.f32.mrf.mxu0
        %v1185 = vadd.f32 0.0, %v1184
        %1186 = vdwg.mxu0
        %v1188 = vsel %vm1011, %v1098, 0
        %v1191 = vsel %vm1011, %v1099, 0
        %1193 = vmatpush.msra.mxu0 0.0
        %1194 = vmatpush.msra.mxu0 0.0
        %1195 = vmatpush.msra.mxu0 0.0
        %1196 = vmatpush.msra.mxu0 0.0
        %1197 = vmatpush.msra.mxu0 0.0
        %1198 = vmatpush.msra.mxu0 0.0
        %1199 = vmatpush.msra.mxu0 0.0
        %1200 = vmatpush.msra.mxu0 0.0
        %1201 = vmatpush.msra.mxu0 0.0
        %1202 = vmatpush.msra.mxu0 0.0
        %1203 = vmatpush.msra.mxu0 0.0
        %1204 = vmatpush.msra.mxu0 0.0
        %1205 = vmatpush.msra.mxu0 0.0
        %1206 = vmatpush.msra.mxu0 0.0
        %1207 = vmatpush.msra.mxu0 %v869
        %1208 = vmatpush.msra.mxu0 %v868
        %1209 = vmatmul.f32.gmra.mxu0 %v1188
        %v1210 = vpop.f32.mrf.mxu0
        %v1211 = vadd.f32 0.0, %v1210
        %1212 = vmatmul.f32.gmra.mxu0 %v1191
        %v1213 = vpop.f32.mrf.mxu0
        %v1214 = vadd.f32 0.0, %v1213
        %1215 = vdwg.mxu0
        %v1216 = vld [vmem:[#allocation15] sm:$0xff]
        %1217 = vrot.lane.b32.xlu0 %v846, 120
        %v1218 = vpop.permute.xlu0 %1217
        %1219 = vrot.lane.b32.xlu0 %v847, 120
        %v1220 = vpop.permute.xlu0 %1219
        %1221 = vrot.lane.b32.xlu0 %v854, 120
        %v1222 = vpop.permute.xlu0 %1221
        %1223 = vrot.lane.b32.xlu0 %v855, 120
        %v1224 = vpop.permute.xlu0 %1223
        %v1225 = vsel %vm870, %v1218, 0
        %v1227 = vsel %vm870, %v1220, 0
        %v1229 = vsel %vm870, %v1222, 0
        %v1231 = vsel %vm870, %v1224, 0
        %1233 = vmatpush.xpose.msra.mxu0 0.0
        %1234 = vmatpush.xpose.msra.mxu0 0.0
        %1235 = vmatpush.xpose.msra.mxu0 0.0
        %1236 = vmatpush.xpose.msra.mxu0 0.0
        %1237 = vmatpush.xpose.msra.mxu0 0.0
        %1238 = vmatpush.xpose.msra.mxu0 0.0
        %1239 = vmatpush.xpose.msra.mxu0 0.0
        %1240 = vmatpush.xpose.msra.mxu0 0.0
        %1241 = vmatpush.xpose.msra.mxu0 0.0
        %1242 = vmatpush.xpose.msra.mxu0 0.0
        %1243 = vmatpush.xpose.msra.mxu0 0.0
        %1244 = vmatpush.xpose.msra.mxu0 0.0
        %1245 = vmatpush.xpose.msra.mxu0 0.0
        %1246 = vmatpush.xpose.msra.mxu0 0.0
        %1247 = vmatpush.xpose.msra.mxu0 %v1231
        %1248 = vmatpush.xpose.msra.mxu0 %v1229
        %1249 = vmatmul.f32.gmra.mxu0 %v1225
        %v1250 = vpop.f32.mrf.mxu0
        %v1251 = vadd.f32 0.0, %v1250
        %1252 = vmatmul.f32.gmra.mxu0 %v1227
        %v1253 = vpop.f32.mrf.mxu0
        %v1254 = vadd.f32 0.0, %v1253
        %1255 = vdwg.mxu0
        %1256 = vrot.lane.b32.xlu0 %v848, 120
        %v1257 = vpop.permute.xlu0 %1256
        %1258 = vrot.lane.b32.xlu0 %v849, 120
        %v1259 = vpop.permute.xlu0 %1258
        %1260 = vrot.lane.b32.xlu0 %v856, 120
        %v1261 = vpop.permute.xlu0 %1260
        %1262 = vrot.lane.b32.xlu0 %v857, 120
        %v1263 = vpop.permute.xlu0 %1262
        %v1264 = vsel %vm870, %v1257, 0
        %v1266 = vsel %vm870, %v1259, 0
        %v1268 = vsel %vm870, %v1261, 0
        %v1270 = vsel %vm870, %v1263, 0
        %1272 = vmatpush.xpose.msra.mxu0 0.0
        %1273 = vmatpush.xpose.msra.mxu0 0.0
        %1274 = vmatpush.xpose.msra.mxu0 0.0
        %1275 = vmatpush.xpose.msra.mxu0 0.0
        %1276 = vmatpush.xpose.msra.mxu0 0.0
        %1277 = vmatpush.xpose.msra.mxu0 0.0
        %1278 = vmatpush.xpose.msra.mxu0 0.0
        %1279 = vmatpush.xpose.msra.mxu0 0.0
        %1280 = vmatpush.xpose.msra.mxu0 0.0
        %1281 = vmatpush.xpose.msra.mxu0 0.0
        %1282 = vmatpush.xpose.msra.mxu0 0.0
        %1283 = vmatpush.xpose.msra.mxu0 0.0
        %1284 = vmatpush.xpose.msra.mxu0 0.0
        %1285 = vmatpush.xpose.msra.mxu0 0.0
        %1286 = vmatpush.xpose.msra.mxu0 %v1270
        %1287 = vmatpush.xpose.msra.mxu0 %v1268
        %1288 = vmatmul.f32.gmra.mxu0 %v1264
        %v1289 = vpop.f32.mrf.mxu0
        %v1290 = vadd.f32 0.0, %v1289
        %1291 = vmatmul.f32.gmra.mxu0 %v1266
        %v1292 = vpop.f32.mrf.mxu0
        %v1293 = vadd.f32 0.0, %v1292
        %1294 = vdwg.mxu0
        %1295 = vrot.lane.b32.xlu0 %v850, 120
        %v1296 = vpop.permute.xlu0 %1295
        %1297 = vrot.lane.b32.xlu0 %v851, 120
        %v1298 = vpop.permute.xlu0 %1297
        %1299 = vrot.lane.b32.xlu0 %v858, 120
        %v1300 = vpop.permute.xlu0 %1299
        %1301 = vrot.lane.b32.xlu0 %v859, 120
        %v1302 = vpop.permute.xlu0 %1301
        %v1303 = vsel %vm870, %v1296, 0
        %v1305 = vsel %vm870, %v1298, 0
        %v1307 = vsel %vm870, %v1300, 0
        %v1309 = vsel %vm870, %v1302, 0
        %1311 = vmatpush.xpose.msra.mxu0 0.0
        %1312 = vmatpush.xpose.msra.mxu0 0.0
        %1313 = vmatpush.xpose.msra.mxu0 0.0
        %1314 = vmatpush.xpose.msra.mxu0 0.0
        %1315 = vmatpush.xpose.msra.mxu0 0.0
        %1316 = vmatpush.xpose.msra.mxu0 0.0
        %1317 = vmatpush.xpose.msra.mxu0 0.0
        %1318 = vmatpush.xpose.msra.mxu0 0.0
        %1319 = vmatpush.xpose.msra.mxu0 0.0
        %1320 = vmatpush.xpose.msra.mxu0 0.0
        %1321 = vmatpush.xpose.msra.mxu0 0.0
        %1322 = vmatpush.xpose.msra.mxu0 0.0
        %1323 = vmatpush.xpose.msra.mxu0 0.0
        %1324 = vmatpush.xpose.msra.mxu0 0.0
        %1325 = vmatpush.xpose.msra.mxu0 %v1309
        %1326 = vmatpush.xpose.msra.mxu0 %v1307
        %1327 = vmatmul.f32.gmra.mxu0 %v1303
        %v1328 = vpop.f32.mrf.mxu0
        %v1329 = vadd.f32 0.0, %v1328
        %1330 = vmatmul.f32.gmra.mxu0 %v1305
        %v1331 = vpop.f32.mrf.mxu0
        %v1332 = vadd.f32 0.0, %v1331
        %1333 = vdwg.mxu0
        %1334 = vrot.lane.b32.xlu0 %v852, 120
        %v1335 = vpop.permute.xlu0 %1334
        %1336 = vrot.lane.b32.xlu0 %v853, 120
        %v1337 = vpop.permute.xlu0 %1336
        %1338 = vrot.lane.b32.xlu0 %v860, 120
        %v1339 = vpop.permute.xlu0 %1338
        %1340 = vrot.lane.b32.xlu0 %v861, 120
        %v1341 = vpop.permute.xlu0 %1340
        %v1342 = vsel %vm870, %v1335, 0
        %v1344 = vsel %vm870, %v1337, 0
        %v1346 = vsel %vm870, %v1339, 0
        %v1348 = vsel %vm870, %v1341, 0
        %1350 = vmatpush.xpose.msra.mxu0 0.0
        %1351 = vmatpush.xpose.msra.mxu0 0.0
        %1352 = vmatpush.xpose.msra.mxu0 0.0
        %1353 = vmatpush.xpose.msra.mxu0 0.0
        %1354 = vmatpush.xpose.msra.mxu0 0.0
        %1355 = vmatpush.xpose.msra.mxu0 0.0
        %1356 = vmatpush.xpose.msra.mxu0 0.0
        %1357 = vmatpush.xpose.msra.mxu0 0.0
        %1358 = vmatpush.xpose.msra.mxu0 0.0
        %1359 = vmatpush.xpose.msra.mxu0 0.0
        %1360 = vmatpush.xpose.msra.mxu0 0.0
        %1361 = vmatpush.xpose.msra.mxu0 0.0
        %1362 = vmatpush.xpose.msra.mxu0 0.0
        %1363 = vmatpush.xpose.msra.mxu0 0.0
        %1364 = vmatpush.xpose.msra.mxu0 %v1348
        %1365 = vmatpush.xpose.msra.mxu0 %v1346
        %1366 = vmatmul.f32.gmra.mxu0 %v1342
        %v1367 = vpop.f32.mrf.mxu0
        %v1368 = vadd.f32 0.0, %v1367
        %1369 = vmatmul.f32.gmra.mxu0 %v1344
        %v1370 = vpop.f32.mrf.mxu0
        %v1371 = vadd.f32 0.0, %v1370
        %1372 = vdwg.mxu0
        %v1373 = vsel %vm1011, %v1251, -inf
        %1374 = vmax.xlane.f32.xlu0 %v1373
        %v1375 = vpop.xlane.xlu0 %1374
        %v1376 = vsel %vm1011, %v1254, -inf
        %1377 = vmax.xlane.f32.xlu0 %v1376
        %v1378 = vpop.xlane.xlu0 %1377
        %v1379 = vsel %vm1011, %v1290, -inf
        %1380 = vmax.xlane.f32.xlu0 %v1379
        %v1381 = vpop.xlane.xlu0 %1380
        %v1382 = vsel %vm1011, %v1293, -inf
        %1383 = vmax.xlane.f32.xlu0 %v1382
        %v1384 = vpop.xlane.xlu0 %1383
        %v1385 = vsel %vm1011, %v1329, -inf
        %1386 = vmax.xlane.f32.xlu0 %v1385
        %v1387 = vpop.xlane.xlu0 %1386
        %v1388 = vsel %vm1011, %v1332, -inf
        %1389 = vmax.xlane.f32.xlu0 %v1388
        %v1390 = vpop.xlane.xlu0 %1389
        %v1391 = vsel %vm1011, %v1368, -inf
        %1392 = vmax.xlane.f32.xlu0 %v1391
        %v1393 = vpop.xlane.xlu0 %1392
        %v1394 = vsel %vm1011, %v1371, -inf
        %1395 = vmax.xlane.f32.xlu0 %v1394
        %v1396 = vpop.xlane.xlu0 %1395
        %v1397 = vsub.f32 %v1251, %v1375
        %v1398 = vsub.f32 %v1254, %v1378
        %v1399 = vsub.f32 %v1290, %v1381
        %v1400 = vsub.f32 %v1293, %v1384
        %v1401 = vsub.f32 %v1329, %v1387
        %v1402 = vsub.f32 %v1332, %v1390
        %v1403 = vsub.f32 %v1368, %v1393
        %v1404 = vsub.f32 %v1371, %v1396
        %v1405 = vmul.f32 %v1397, 1.442695
        %v1406 = vpow.pop %v1405
        %v1407 = vmul.f32 %v1398, 1.442695
        %v1408 = vpow.pop %v1407
        %v1409 = vmul.f32 %v1399, 1.442695
        %v1410 = vpow.pop %v1409
        %v1411 = vmul.f32 %v1400, 1.442695
        %v1412 = vpow.pop %v1411
        %v1413 = vmul.f32 %v1401, 1.442695
        %v1414 = vpow.pop %v1413
        %v1415 = vmul.f32 %v1402, 1.442695
        %v1416 = vpow.pop %v1415
        %v1417 = vmul.f32 %v1403, 1.442695
        %v1418 = vpow.pop %v1417
        %v1419 = vmul.f32 %v1404, 1.442695
        %v1420 = vpow.pop %v1419
        %v1421 = vsel %vm1011, %v1406, 0.0
        %1422 = vadd.xlane.f32.xlu0 %v1421
        %v1423 = vpop.xlane.xlu0 %1422
        %v1424 = vsel %vm1011, %v1408, 0.0
        %1425 = vadd.xlane.f32.xlu0 %v1424
        %v1426 = vpop.xlane.xlu0 %1425
        %v1427 = vsel %vm1011, %v1410, 0.0
        %1428 = vadd.xlane.f32.xlu0 %v1427
        %v1429 = vpop.xlane.xlu0 %1428
        %v1430 = vsel %vm1011, %v1412, 0.0
        %1431 = vadd.xlane.f32.xlu0 %v1430
        %v1432 = vpop.xlane.xlu0 %1431
        %v1433 = vsel %vm1011, %v1414, 0.0
        %1434 = vadd.xlane.f32.xlu0 %v1433
        %v1435 = vpop.xlane.xlu0 %1434
        %v1436 = vsel %vm1011, %v1416, 0.0
        %1437 = vadd.xlane.f32.xlu0 %v1436
        %v1438 = vpop.xlane.xlu0 %1437
        %v1439 = vsel %vm1011, %v1418, 0.0
        %1440 = vadd.xlane.f32.xlu0 %v1439
        %v1441 = vpop.xlane.xlu0 %1440
        %v1442 = vsel %vm1011, %v1420, 0.0
        %1443 = vadd.xlane.f32.xlu0 %v1442
        %v1444 = vpop.xlane.xlu0 %1443
        %v1445 = vrcp.pop %v1423
        %v1446 = vrcp.pop %v1426
        %v1447 = vrcp.pop %v1429
        %v1448 = vrcp.pop %v1432
        %v1449 = vrcp.pop %v1435
        %v1450 = vrcp.pop %v1438
        %v1451 = vrcp.pop %v1441
        %v1452 = vrcp.pop %v1444
        %v1453 = vmul.f32 %v1406, %v1445
        %v1454 = vmul.f32 %v1408, %v1446
        %v1455 = vmul.f32 %v1410, %v1447
        %v1456 = vmul.f32 %v1412, %v1448
        %v1457 = vmul.f32 %v1414, %v1449
        %v1458 = vmul.f32 %v1416, %v1450
        %v1459 = vmul.f32 %v1418, %v1451
        %v1460 = vmul.f32 %v1420, %v1452
        %1463 = vrot.lane.b32.xlu0 %v862, 120
        %v1464 = vpop.permute.xlu0 %1463
        %1465 = vrot.lane.b32.xlu0 %v863, 120
        %v1466 = vpop.permute.xlu0 %1465
        %v1470 = vsel %vm1011, %v1453, 0
        %v1473 = vsel %vm1011, %v1454, 0
        %1475 = vmatpush.msra.mxu0 0.0
        %1476 = vmatpush.msra.mxu0 0.0
        %1477 = vmatpush.msra.mxu0 0.0
        %1478 = vmatpush.msra.mxu0 0.0
        %1479 = vmatpush.msra.mxu0 0.0
        %1480 = vmatpush.msra.mxu0 0.0
        %1481 = vmatpush.msra.mxu0 0.0
        %1482 = vmatpush.msra.mxu0 0.0
        %1483 = vmatpush.msra.mxu0 0.0
        %1484 = vmatpush.msra.mxu0 0.0
        %1485 = vmatpush.msra.mxu0 0.0
        %1486 = vmatpush.msra.mxu0 0.0
        %1487 = vmatpush.msra.mxu0 0.0
        %1488 = vmatpush.msra.mxu0 0.0
        %1489 = vmatpush.msra.mxu0 %v1466
        %1490 = vmatpush.msra.mxu0 %v1464
        %1491 = vmatmul.f32.gmra.mxu0 %v1470
        %v1492 = vpop.f32.mrf.mxu0
        %v1493 = vadd.f32 0.0, %v1492
        %1494 = vmatmul.f32.gmra.mxu0 %v1473
        %v1495 = vpop.f32.mrf.mxu0
        %v1496 = vadd.f32 0.0, %v1495
        %1497 = vdwg.mxu0
        %1500 = vrot.lane.b32.xlu0 %v864, 120
        %v1501 = vpop.permute.xlu0 %1500
        %1502 = vrot.lane.b32.xlu0 %v865, 120
        %v1503 = vpop.permute.xlu0 %1502
        %v1507 = vsel %vm1011, %v1455, 0
        %v1510 = vsel %vm1011, %v1456, 0
        %1512 = vmatpush.msra.mxu0 0.0
        %1513 = vmatpush.msra.mxu0 0.0
        %1514 = vmatpush.msra.mxu0 0.0
        %1515 = vmatpush.msra.mxu0 0.0
        %1516 = vmatpush.msra.mxu0 0.0
        %1517 = vmatpush.msra.mxu0 0.0
        %1518 = vmatpush.msra.mxu0 0.0
        %1519 = vmatpush.msra.mxu0 0.0
        %1520 = vmatpush.msra.mxu0 0.0
        %1521 = vmatpush.msra.mxu0 0.0
        %1522 = vmatpush.msra.mxu0 0.0
        %1523 = vmatpush.msra.mxu0 0.0
        %1524 = vmatpush.msra.mxu0 0.0
        %1525 = vmatpush.msra.mxu0 0.0
        %1526 = vmatpush.msra.mxu0 %v1503
        %1527 = vmatpush.msra.mxu0 %v1501
        %1528 = vmatmul.f32.gmra.mxu0 %v1507
        %v1529 = vpop.f32.mrf.mxu0
        %v1530 = vadd.f32 0.0, %v1529
        %1531 = vmatmul.f32.gmra.mxu0 %v1510
        %v1532 = vpop.f32.mrf.mxu0
        %v1533 = vadd.f32 0.0, %v1532
        %1534 = vdwg.mxu0
        %1537 = vrot.lane.b32.xlu0 %v866, 120
        %v1538 = vpop.permute.xlu0 %1537
        %1539 = vrot.lane.b32.xlu0 %v867, 120
        %v1540 = vpop.permute.xlu0 %1539
        %v1544 = vsel %vm1011, %v1457, 0
        %v1547 = vsel %vm1011, %v1458, 0
        %1549 = vmatpush.msra.mxu0 0.0
        %1550 = vmatpush.msra.mxu0 0.0
        %1551 = vmatpush.msra.mxu0 0.0
        %1552 = vmatpush.msra.mxu0 0.0
        %1553 = vmatpush.msra.mxu0 0.0
        %1554 = vmatpush.msra.mxu0 0.0
        %1555 = vmatpush.msra.mxu0 0.0
        %1556 = vmatpush.msra.mxu0 0.0
        %1557 = vmatpush.msra.mxu0 0.0
        %1558 = vmatpush.msra.mxu0 0.0
        %1559 = vmatpush.msra.mxu0 0.0
        %1560 = vmatpush.msra.mxu0 0.0
        %1561 = vmatpush.msra.mxu0 0.0
        %1562 = vmatpush.msra.mxu0 0.0
        %1563 = vmatpush.msra.mxu0 %v1540
        %1564 = vmatpush.msra.mxu0 %v1538
        %1565 = vmatmul.f32.gmra.mxu0 %v1544
        %v1566 = vpop.f32.mrf.mxu0
        %v1567 = vadd.f32 0.0, %v1566
        %1568 = vmatmul.f32.gmra.mxu0 %v1547
        %v1569 = vpop.f32.mrf.mxu0
        %v1570 = vadd.f32 0.0, %v1569
        %1571 = vdwg.mxu0
        %1574 = vrot.lane.b32.xlu0 %v868, 120
        %v1575 = vpop.permute.xlu0 %1574
        %1576 = vrot.lane.b32.xlu0 %v869, 120
        %v1577 = vpop.permute.xlu0 %1576
        %v1581 = vsel %vm1011, %v1459, 0
        %v1584 = vsel %vm1011, %v1460, 0
        %1586 = vmatpush.msra.mxu0 0.0
        %1587 = vmatpush.msra.mxu0 0.0
        %1588 = vmatpush.msra.mxu0 0.0
        %1589 = vmatpush.msra.mxu0 0.0
        %1590 = vmatpush.msra.mxu0 0.0
        %1591 = vmatpush.msra.mxu0 0.0
        %1592 = vmatpush.msra.mxu0 0.0
        %1593 = vmatpush.msra.mxu0 0.0
        %1594 = vmatpush.msra.mxu0 0.0
        %1595 = vmatpush.msra.mxu0 0.0
        %1596 = vmatpush.msra.mxu0 0.0
        %1597 = vmatpush.msra.mxu0 0.0
        %1598 = vmatpush.msra.mxu0 0.0
        %1599 = vmatpush.msra.mxu0 0.0
        %1600 = vmatpush.msra.mxu0 %v1577
        %1601 = vmatpush.msra.mxu0 %v1575
        %1602 = vmatmul.f32.gmra.mxu0 %v1581
        %v1603 = vpop.f32.mrf.mxu0
        %v1604 = vadd.f32 0.0, %v1603
        %1605 = vmatmul.f32.gmra.mxu0 %v1584
        %v1606 = vpop.f32.mrf.mxu0
        %v1607 = vadd.f32 0.0, %v1606
        %1608 = vdwg.mxu0
        %v1609 = vld [vmem:[#allocation15 + $0x8] sm:$0xff]
        %v1611 = vsel %vm870, %v1493, 0
        %v1614 = vsel %vm870, %v1496, 0
        %v1617 = vsel %vm870, %v1530, 0
        %v1620 = vsel %vm870, %v1533, 0
        %v1623 = vsel %vm870, %v1567, 0
        %v1626 = vsel %vm870, %v1570, 0
        %v1629 = vsel %vm870, %v1604, 0
        %v1632 = vsel %vm870, %v1607, 0
        %1634 = vmatpush.msra.mxu0 0.0
        %1635 = vmatpush.msra.mxu0 0.0
        %1636 = vmatpush.msra.mxu0 0.0
        %1637 = vmatpush.msra.mxu0 0.0
        %1638 = vmatpush.msra.mxu0 0.0
        %1639 = vmatpush.msra.mxu0 0.0
        %1640 = vmatpush.msra.mxu0 0.0
        %1641 = vmatpush.msra.mxu0 0.0
        %1642 = vmatpush.msra.mxu0 0.0
        %1643 = vmatpush.msra.mxu0 0.0
        %1644 = vmatpush.msra.mxu0 0.0
        %1645 = vmatpush.msra.mxu0 0.0
        %1646 = vmatpush.msra.mxu0 0.0
        %1647 = vmatpush.msra.mxu0 0.0
        %1648 = vmatpush.msra.mxu0 0.0
        %1649 = vmatpush.msra.mxu0 %v1609
        %1650 = vmatmul.f32.gmra.mxu0 %v1611
        %v1651 = vpop.f32.mrf.mxu0
        %v1652 = vadd.f32 0.0, %v1651
        %1653 = vmatmul.f32.gmra.mxu0 %v1614
        %v1654 = vpop.f32.mrf.mxu0
        %v1655 = vadd.f32 0.0, %v1654
        %1656 = vmatmul.f32.gmra.mxu0 %v1617
        %v1657 = vpop.f32.mrf.mxu0
        %v1658 = vadd.f32 0.0, %v1657
        %1659 = vmatmul.f32.gmra.mxu0 %v1620
        %v1660 = vpop.f32.mrf.mxu0
        %v1661 = vadd.f32 0.0, %v1660
        %1662 = vmatmul.f32.gmra.mxu0 %v1623
        %v1663 = vpop.f32.mrf.mxu0
        %v1664 = vadd.f32 0.0, %v1663
        %1665 = vmatmul.f32.gmra.mxu0 %v1626
        %v1666 = vpop.f32.mrf.mxu0
        %v1667 = vadd.f32 0.0, %v1666
        %1668 = vmatmul.f32.gmra.mxu0 %v1629
        %v1669 = vpop.f32.mrf.mxu0
        %v1670 = vadd.f32 0.0, %v1669
        %1671 = vmatmul.f32.gmra.mxu0 %v1632
        %v1672 = vpop.f32.mrf.mxu0
        %v1673 = vadd.f32 0.0, %v1672
        %1674 = vdwg.mxu0
        %v1676 = vsel %vm870, %v1124, 0
        %v1679 = vsel %vm870, %v1127, 0
        %v1682 = vsel %vm870, %v1153, 0
        %v1685 = vsel %vm870, %v1156, 0
        %v1688 = vsel %vm870, %v1182, 0
        %v1691 = vsel %vm870, %v1185, 0
        %v1694 = vsel %vm870, %v1211, 0
        %v1697 = vsel %vm870, %v1214, 0
        %1699 = vmatpush.msra.mxu0 0.0
        %1700 = vmatpush.msra.mxu0 0.0
        %1701 = vmatpush.msra.mxu0 0.0
        %1702 = vmatpush.msra.mxu0 0.0
        %1703 = vmatpush.msra.mxu0 0.0
        %1704 = vmatpush.msra.mxu0 0.0
        %1705 = vmatpush.msra.mxu0 0.0
        %1706 = vmatpush.msra.mxu0 0.0
        %1707 = vmatpush.msra.mxu0 0.0
        %1708 = vmatpush.msra.mxu0 0.0
        %1709 = vmatpush.msra.mxu0 0.0
        %1710 = vmatpush.msra.mxu0 0.0
        %1711 = vmatpush.msra.mxu0 0.0
        %1712 = vmatpush.msra.mxu0 0.0
        %1713 = vmatpush.msra.mxu0 0.0
        %1714 = vmatpush.msra.mxu0 %v1216
        %1715 = vmatmul.f32.gmra.mxu0 %v1676
        %v1716 = vpop.f32.mrf.mxu0
        %v1717 = vadd.f32 %v1652, %v1716
        %1718 = vmatmul.f32.gmra.mxu0 %v1679
        %v1719 = vpop.f32.mrf.mxu0
        %v1720 = vadd.f32 %v1655, %v1719
        %1721 = vmatmul.f32.gmra.mxu0 %v1682
        %v1722 = vpop.f32.mrf.mxu0
        %v1723 = vadd.f32 %v1658, %v1722
        %1724 = vmatmul.f32.gmra.mxu0 %v1685
        %v1725 = vpop.f32.mrf.mxu0
        %v1726 = vadd.f32 %v1661, %v1725
        %1727 = vmatmul.f32.gmra.mxu0 %v1688
        %v1728 = vpop.f32.mrf.mxu0
        %v1729 = vadd.f32 %v1664, %v1728
        %1730 = vmatmul.f32.gmra.mxu0 %v1691
        %v1731 = vpop.f32.mrf.mxu0
        %v1732 = vadd.f32 %v1667, %v1731
        %1733 = vmatmul.f32.gmra.mxu0 %v1694
        %v1734 = vpop.f32.mrf.mxu0
        %v1735 = vadd.f32 %v1670, %v1734
        %1736 = vmatmul.f32.gmra.mxu0 %v1697
        %v1737 = vpop.f32.mrf.mxu0
        %v1738 = vadd.f32 %v1673, %v1737
        %1739 = vdwg.mxu0
        %1740 = vrot.lane.b32.xlu0 %v846, 112
        %v1741 = vpop.permute.xlu0 %1740
        %1742 = vrot.lane.b32.xlu0 %v847, 112
        %v1743 = vpop.permute.xlu0 %1742
        %1744 = vrot.lane.b32.xlu0 %v854, 112
        %v1745 = vpop.permute.xlu0 %1744
        %1746 = vrot.lane.b32.xlu0 %v855, 112
        %v1747 = vpop.permute.xlu0 %1746
        %v1748 = vsel %vm870, %v1741, 0
        %v1750 = vsel %vm870, %v1743, 0
        %v1752 = vsel %vm870, %v1745, 0
        %v1754 = vsel %vm870, %v1747, 0
        %1756 = vmatpush.xpose.msra.mxu0 0.0
        %1757 = vmatpush.xpose.msra.mxu0 0.0
        %1758 = vmatpush.xpose.msra.mxu0 0.0
        %1759 = vmatpush.xpose.msra.mxu0 0.0
        %1760 = vmatpush.xpose.msra.mxu0 0.0
        %1761 = vmatpush.xpose.msra.mxu0 0.0
        %1762 = vmatpush.xpose.msra.mxu0 0.0
        %1763 = vmatpush.xpose.msra.mxu0 0.0
        %1764 = vmatpush.xpose.msra.mxu0 0.0
        %1765 = vmatpush.xpose.msra.mxu0 0.0
        %1766 = vmatpush.xpose.msra.mxu0 0.0
        %1767 = vmatpush.xpose.msra.mxu0 0.0
        %1768 = vmatpush.xpose.msra.mxu0 0.0
        %1769 = vmatpush.xpose.msra.mxu0 0.0
        %1770 = vmatpush.xpose.msra.mxu0 %v1754
        %1771 = vmatpush.xpose.msra.mxu0 %v1752
        %1772 = vmatmul.f32.gmra.mxu0 %v1748
        %v1773 = vpop.f32.mrf.mxu0
        %v1774 = vadd.f32 0.0, %v1773
        %1775 = vmatmul.f32.gmra.mxu0 %v1750
        %v1776 = vpop.f32.mrf.mxu0
        %v1777 = vadd.f32 0.0, %v1776
        %1778 = vdwg.mxu0
        %1779 = vrot.lane.b32.xlu0 %v848, 112
        %v1780 = vpop.permute.xlu0 %1779
        %1781 = vrot.lane.b32.xlu0 %v849, 112
        %v1782 = vpop.permute.xlu0 %1781
        %1783 = vrot.lane.b32.xlu0 %v856, 112
        %v1784 = vpop.permute.xlu0 %1783
        %1785 = vrot.lane.b32.xlu0 %v857, 112
        %v1786 = vpop.permute.xlu0 %1785
        %v1787 = vsel %vm870, %v1780, 0
        %v1789 = vsel %vm870, %v1782, 0
        %v1791 = vsel %vm870, %v1784, 0
        %v1793 = vsel %vm870, %v1786, 0
        %1795 = vmatpush.xpose.msra.mxu0 0.0
        %1796 = vmatpush.xpose.msra.mxu0 0.0
        %1797 = vmatpush.xpose.msra.mxu0 0.0
        %1798 = vmatpush.xpose.msra.mxu0 0.0
        %1799 = vmatpush.xpose.msra.mxu0 0.0
        %1800 = vmatpush.xpose.msra.mxu0 0.0
        %1801 = vmatpush.xpose.msra.mxu0 0.0
        %1802 = vmatpush.xpose.msra.mxu0 0.0
        %1803 = vmatpush.xpose.msra.mxu0 0.0
        %1804 = vmatpush.xpose.msra.mxu0 0.0
        %1805 = vmatpush.xpose.msra.mxu0 0.0
        %1806 = vmatpush.xpose.msra.mxu0 0.0
        %1807 = vmatpush.xpose.msra.mxu0 0.0
        %1808 = vmatpush.xpose.msra.mxu0 0.0
        %1809 = vmatpush.xpose.msra.mxu0 %v1793
        %1810 = vmatpush.xpose.msra.mxu0 %v1791
        %1811 = vmatmul.f32.gmra.mxu0 %v1787
        %v1812 = vpop.f32.mrf.mxu0
        %v1813 = vadd.f32 0.0, %v1812
        %1814 = vmatmul.f32.gmra.mxu0 %v1789
        %v1815 = vpop.f32.mrf.mxu0
        %v1816 = vadd.f32 0.0, %v1815
        %1817 = vdwg.mxu0
        %1818 = vrot.lane.b32.xlu0 %v850, 112
        %v1819 = vpop.permute.xlu0 %1818
        %1820 = vrot.lane.b32.xlu0 %v851, 112
        %v1821 = vpop.permute.xlu0 %1820
        %1822 = vrot.lane.b32.xlu0 %v858, 112
        %v1823 = vpop.permute.xlu0 %1822
        %1824 = vrot.lane.b32.xlu0 %v859, 112
        %v1825 = vpop.permute.xlu0 %1824
        %v1826 = vsel %vm870, %v1819, 0
        %v1828 = vsel %vm870, %v1821, 0
        %v1830 = vsel %vm870, %v1823, 0
        %v1832 = vsel %vm870, %v1825, 0
        %1834 = vmatpush.xpose.msra.mxu0 0.0
        %1835 = vmatpush.xpose.msra.mxu0 0.0
        %1836 = vmatpush.xpose.msra.mxu0 0.0
        %1837 = vmatpush.xpose.msra.mxu0 0.0
        %1838 = vmatpush.xpose.msra.mxu0 0.0
        %1839 = vmatpush.xpose.msra.mxu0 0.0
        %1840 = vmatpush.xpose.msra.mxu0 0.0
        %1841 = vmatpush.xpose.msra.mxu0 0.0
        %1842 = vmatpush.xpose.msra.mxu0 0.0
        %1843 = vmatpush.xpose.msra.mxu0 0.0
        %1844 = vmatpush.xpose.msra.mxu0 0.0
        %1845 = vmatpush.xpose.msra.mxu0 0.0
        %1846 = vmatpush.xpose.msra.mxu0 0.0
        %1847 = vmatpush.xpose.msra.mxu0 0.0
        %1848 = vmatpush.xpose.msra.mxu0 %v1832
        %1849 = vmatpush.xpose.msra.mxu0 %v1830
        %1850 = vmatmul.f32.gmra.mxu0 %v1826
        %v1851 = vpop.f32.mrf.mxu0
        %v1852 = vadd.f32 0.0, %v1851
        %1853 = vmatmul.f32.gmra.mxu0 %v1828
        %v1854 = vpop.f32.mrf.mxu0
        %v1855 = vadd.f32 0.0, %v1854
        %1856 = vdwg.mxu0
        %1857 = vrot.lane.b32.xlu0 %v852, 112
        %v1858 = vpop.permute.xlu0 %1857
        %1859 = vrot.lane.b32.xlu0 %v853, 112
        %v1860 = vpop.permute.xlu0 %1859
        %1861 = vrot.lane.b32.xlu0 %v860, 112
        %v1862 = vpop.permute.xlu0 %1861
        %1863 = vrot.lane.b32.xlu0 %v861, 112
        %v1864 = vpop.permute.xlu0 %1863
        %v1865 = vsel %vm870, %v1858, 0
        %v1867 = vsel %vm870, %v1860, 0
        %v1869 = vsel %vm870, %v1862, 0
        %v1871 = vsel %vm870, %v1864, 0
        %1873 = vmatpush.xpose.msra.mxu0 0.0
        %1874 = vmatpush.xpose.msra.mxu0 0.0
        %1875 = vmatpush.xpose.msra.mxu0 0.0
        %1876 = vmatpush.xpose.msra.mxu0 0.0
        %1877 = vmatpush.xpose.msra.mxu0 0.0
        %1878 = vmatpush.xpose.msra.mxu0 0.0
        %1879 = vmatpush.xpose.msra.mxu0 0.0
        %1880 = vmatpush.xpose.msra.mxu0 0.0
        %1881 = vmatpush.xpose.msra.mxu0 0.0
        %1882 = vmatpush.xpose.msra.mxu0 0.0
        %1883 = vmatpush.xpose.msra.mxu0 0.0
        %1884 = vmatpush.xpose.msra.mxu0 0.0
        %1885 = vmatpush.xpose.msra.mxu0 0.0
        %1886 = vmatpush.xpose.msra.mxu0 0.0
        %1887 = vmatpush.xpose.msra.mxu0 %v1871
        %1888 = vmatpush.xpose.msra.mxu0 %v1869
        %1889 = vmatmul.f32.gmra.mxu0 %v1865
        %v1890 = vpop.f32.mrf.mxu0
        %v1891 = vadd.f32 0.0, %v1890
        %1892 = vmatmul.f32.gmra.mxu0 %v1867
        %v1893 = vpop.f32.mrf.mxu0
        %v1894 = vadd.f32 0.0, %v1893
        %1895 = vdwg.mxu0
        %v1896 = vsel %vm1011, %v1774, -inf
        %1897 = vmax.xlane.f32.xlu0 %v1896
        %v1898 = vpop.xlane.xlu0 %1897
        %v1899 = vsel %vm1011, %v1777, -inf
        %1900 = vmax.xlane.f32.xlu0 %v1899
        %v1901 = vpop.xlane.xlu0 %1900
        %v1902 = vsel %vm1011, %v1813, -inf
        %1903 = vmax.xlane.f32.xlu0 %v1902
        %v1904 = vpop.xlane.xlu0 %1903
        %v1905 = vsel %vm1011, %v1816, -inf
        %1906 = vmax.xlane.f32.xlu0 %v1905
        %v1907 = vpop.xlane.xlu0 %1906
        %v1908 = vsel %vm1011, %v1852, -inf
        %1909 = vmax.xlane.f32.xlu0 %v1908
        %v1910 = vpop.xlane.xlu0 %1909
        %v1911 = vsel %vm1011, %v1855, -inf
        %1912 = vmax.xlane.f32.xlu0 %v1911
        %v1913 = vpop.xlane.xlu0 %1912
        %v1914 = vsel %vm1011, %v1891, -inf
        %1915 = vmax.xlane.f32.xlu0 %v1914
        %v1916 = vpop.xlane.xlu0 %1915
        %v1917 = vsel %vm1011, %v1894, -inf
        %1918 = vmax.xlane.f32.xlu0 %v1917
        %v1919 = vpop.xlane.xlu0 %1918
        %v1920 = vsub.f32 %v1774, %v1898
        %v1921 = vsub.f32 %v1777, %v1901
        %v1922 = vsub.f32 %v1813, %v1904
        %v1923 = vsub.f32 %v1816, %v1907
        %v1924 = vsub.f32 %v1852, %v1910
        %v1925 = vsub.f32 %v1855, %v1913
        %v1926 = vsub.f32 %v1891, %v1916
        %v1927 = vsub.f32 %v1894, %v1919
        %v1928 = vmul.f32 %v1920, 1.442695
        %v1929 = vpow.pop %v1928
        %v1930 = vmul.f32 %v1921, 1.442695
        %v1931 = vpow.pop %v1930
        %v1932 = vmul.f32 %v1922, 1.442695
        %v1933 = vpow.pop %v1932
        %v1934 = vmul.f32 %v1923, 1.442695
        %v1935 = vpow.pop %v1934
        %v1936 = vmul.f32 %v1924, 1.442695
        %v1937 = vpow.pop %v1936
        %v1938 = vmul.f32 %v1925, 1.442695
        %v1939 = vpow.pop %v1938
        %v1940 = vmul.f32 %v1926, 1.442695
        %v1941 = vpow.pop %v1940
        %v1942 = vmul.f32 %v1927, 1.442695
        %v1943 = vpow.pop %v1942
        %v1944 = vsel %vm1011, %v1929, 0.0
        %1945 = vadd.xlane.f32.xlu0 %v1944
        %v1946 = vpop.xlane.xlu0 %1945
        %v1947 = vsel %vm1011, %v1931, 0.0
        %1948 = vadd.xlane.f32.xlu0 %v1947
        %v1949 = vpop.xlane.xlu0 %1948
        %v1950 = vsel %vm1011, %v1933, 0.0
        %1951 = vadd.xlane.f32.xlu0 %v1950
        %v1952 = vpop.xlane.xlu0 %1951
        %v1953 = vsel %vm1011, %v1935, 0.0
        %1954 = vadd.xlane.f32.xlu0 %v1953
        %v1955 = vpop.xlane.xlu0 %1954
        %v1956 = vsel %vm1011, %v1937, 0.0
        %1957 = vadd.xlane.f32.xlu0 %v1956
        %v1958 = vpop.xlane.xlu0 %1957
        %v1959 = vsel %vm1011, %v1939, 0.0
        %1960 = vadd.xlane.f32.xlu0 %v1959
        %v1961 = vpop.xlane.xlu0 %1960
        %v1962 = vsel %vm1011, %v1941, 0.0
        %1963 = vadd.xlane.f32.xlu0 %v1962
        %v1964 = vpop.xlane.xlu0 %1963
        %v1965 = vsel %vm1011, %v1943, 0.0
        %1966 = vadd.xlane.f32.xlu0 %v1965
        %v1967 = vpop.xlane.xlu0 %1966
        %v1968 = vrcp.pop %v1946
        %v1969 = vrcp.pop %v1949
        %v1970 = vrcp.pop %v1952
        %v1971 = vrcp.pop %v1955
        %v1972 = vrcp.pop %v1958
        %v1973 = vrcp.pop %v1961
        %v1974 = vrcp.pop %v1964
        %v1975 = vrcp.pop %v1967
        %v1976 = vmul.f32 %v1929, %v1968
        %v1977 = vmul.f32 %v1931, %v1969
        %v1978 = vmul.f32 %v1933, %v1970
        %v1979 = vmul.f32 %v1935, %v1971
        %v1980 = vmul.f32 %v1937, %v1972
        %v1981 = vmul.f32 %v1939, %v1973
        %v1982 = vmul.f32 %v1941, %v1974
        %v1983 = vmul.f32 %v1943, %v1975
        %1984 = vrot.lane.b32.xlu0 %v862, 112
        %v1985 = vpop.permute.xlu0 %1984
        %1986 = vrot.lane.b32.xlu0 %v863, 112
        %v1987 = vpop.permute.xlu0 %1986
        %v1991 = vsel %vm1011, %v1976, 0
        %v1994 = vsel %vm1011, %v1977, 0
        %1996 = vmatpush.msra.mxu0 0.0
        %1997 = vmatpush.msra.mxu0 0.0
        %1998 = vmatpush.msra.mxu0 0.0
        %1999 = vmatpush.msra.mxu0 0.0
        %2000 = vmatpush.msra.mxu0 0.0
        %2001 = vmatpush.msra.mxu0 0.0
        %2002 = vmatpush.msra.mxu0 0.0
        %2003 = vmatpush.msra.mxu0 0.0
        %2004 = vmatpush.msra.mxu0 0.0
        %2005 = vmatpush.msra.mxu0 0.0
        %2006 = vmatpush.msra.mxu0 0.0
        %2007 = vmatpush.msra.mxu0 0.0
        %2008 = vmatpush.msra.mxu0 0.0
        %2009 = vmatpush.msra.mxu0 0.0
        %2010 = vmatpush.msra.mxu0 %v1987
        %2011 = vmatpush.msra.mxu0 %v1985
        %2012 = vmatmul.f32.gmra.mxu0 %v1991
        %v2013 = vpop.f32.mrf.mxu0
        %v2014 = vadd.f32 0.0, %v2013
        %2015 = vmatmul.f32.gmra.mxu0 %v1994
        %v2016 = vpop.f32.mrf.mxu0
        %v2017 = vadd.f32 0.0, %v2016
        %2018 = vdwg.mxu0
        %2019 = vrot.lane.b32.xlu0 %v864, 112
        %v2020 = vpop.permute.xlu0 %2019
        %2021 = vrot.lane.b32.xlu0 %v865, 112
        %v2022 = vpop.permute.xlu0 %2021
        %v2026 = vsel %vm1011, %v1978, 0
        %v2029 = vsel %vm1011, %v1979, 0
        %2031 = vmatpush.msra.mxu0 0.0
        %2032 = vmatpush.msra.mxu0 0.0
        %2033 = vmatpush.msra.mxu0 0.0
        %2034 = vmatpush.msra.mxu0 0.0
        %2035 = vmatpush.msra.mxu0 0.0
        %2036 = vmatpush.msra.mxu0 0.0
        %2037 = vmatpush.msra.mxu0 0.0
        %2038 = vmatpush.msra.mxu0 0.0
        %2039 = vmatpush.msra.mxu0 0.0
        %2040 = vmatpush.msra.mxu0 0.0
        %2041 = vmatpush.msra.mxu0 0.0
        %2042 = vmatpush.msra.mxu0 0.0
        %2043 = vmatpush.msra.mxu0 0.0
        %2044 = vmatpush.msra.mxu0 0.0
        %2045 = vmatpush.msra.mxu0 %v2022
        %2046 = vmatpush.msra.mxu0 %v2020
        %2047 = vmatmul.f32.gmra.mxu0 %v2026
        %v2048 = vpop.f32.mrf.mxu0
        %v2049 = vadd.f32 0.0, %v2048
        %2050 = vmatmul.f32.gmra.mxu0 %v2029
        %v2051 = vpop.f32.mrf.mxu0
        %v2052 = vadd.f32 0.0, %v2051
        %2053 = vdwg.mxu0
        %2054 = vrot.lane.b32.xlu0 %v866, 112
        %v2055 = vpop.permute.xlu0 %2054
        %2056 = vrot.lane.b32.xlu0 %v867, 112
        %v2057 = vpop.permute.xlu0 %2056
        %v2061 = vsel %vm1011, %v1980, 0
        %v2064 = vsel %vm1011, %v1981, 0
        %2066 = vmatpush.msra.mxu0 0.0
        %2067 = vmatpush.msra.mxu0 0.0
        %2068 = vmatpush.msra.mxu0 0.0
        %2069 = vmatpush.msra.mxu0 0.0
        %2070 = vmatpush.msra.mxu0 0.0
        %2071 = vmatpush.msra.mxu0 0.0
        %2072 = vmatpush.msra.mxu0 0.0
        %2073 = vmatpush.msra.mxu0 0.0
        %2074 = vmatpush.msra.mxu0 0.0
        %2075 = vmatpush.msra.mxu0 0.0
        %2076 = vmatpush.msra.mxu0 0.0
        %2077 = vmatpush.msra.mxu0 0.0
        %2078 = vmatpush.msra.mxu0 0.0
        %2079 = vmatpush.msra.mxu0 0.0
        %2080 = vmatpush.msra.mxu0 %v2057
        %2081 = vmatpush.msra.mxu0 %v2055
        %2082 = vmatmul.f32.gmra.mxu0 %v2061
        %v2083 = vpop.f32.mrf.mxu0
        %v2084 = vadd.f32 0.0, %v2083
        %2085 = vmatmul.f32.gmra.mxu0 %v2064
        %v2086 = vpop.f32.mrf.mxu0
        %v2087 = vadd.f32 0.0, %v2086
        %2088 = vdwg.mxu0
        %2089 = vrot.lane.b32.xlu0 %v868, 112
        %v2090 = vpop.permute.xlu0 %2089
        %2091 = vrot.lane.b32.xlu0 %v869, 112
        %v2092 = vpop.permute.xlu0 %2091
        %v2096 = vsel %vm1011, %v1982, 0
        %v2099 = vsel %vm1011, %v1983, 0
        %2101 = vmatpush.msra.mxu0 0.0
        %2102 = vmatpush.msra.mxu0 0.0
        %2103 = vmatpush.msra.mxu0 0.0
        %2104 = vmatpush.msra.mxu0 0.0
        %2105 = vmatpush.msra.mxu0 0.0
        %2106 = vmatpush.msra.mxu0 0.0
        %2107 = vmatpush.msra.mxu0 0.0
        %2108 = vmatpush.msra.mxu0 0.0
        %2109 = vmatpush.msra.mxu0 0.0
        %2110 = vmatpush.msra.mxu0 0.0
        %2111 = vmatpush.msra.mxu0 0.0
        %2112 = vmatpush.msra.mxu0 0.0
        %2113 = vmatpush.msra.mxu0 0.0
        %2114 = vmatpush.msra.mxu0 0.0
        %2115 = vmatpush.msra.mxu0 %v2092
        %2116 = vmatpush.msra.mxu0 %v2090
        %2117 = vmatmul.f32.gmra.mxu0 %v2096
        %v2118 = vpop.f32.mrf.mxu0
        %v2119 = vadd.f32 0.0, %v2118
        %2120 = vmatmul.f32.gmra.mxu0 %v2099
        %v2121 = vpop.f32.mrf.mxu0
        %v2122 = vadd.f32 0.0, %v2121
        %2123 = vdwg.mxu0
        %v2124 = vld [vmem:[#allocation15 + $0x10] sm:$0xff]
        %v2126 = vsel %vm870, %v2014, 0
        %v2129 = vsel %vm870, %v2017, 0
        %v2132 = vsel %vm870, %v2049, 0
        %v2135 = vsel %vm870, %v2052, 0
        %v2138 = vsel %vm870, %v2084, 0
        %v2141 = vsel %vm870, %v2087, 0
        %v2144 = vsel %vm870, %v2119, 0
        %v2147 = vsel %vm870, %v2122, 0
        %2149 = vmatpush.msra.mxu0 0.0
        %2150 = vmatpush.msra.mxu0 0.0
        %2151 = vmatpush.msra.mxu0 0.0
        %2152 = vmatpush.msra.mxu0 0.0
        %2153 = vmatpush.msra.mxu0 0.0
        %2154 = vmatpush.msra.mxu0 0.0
        %2155 = vmatpush.msra.mxu0 0.0
        %2156 = vmatpush.msra.mxu0 0.0
        %2157 = vmatpush.msra.mxu0 0.0
        %2158 = vmatpush.msra.mxu0 0.0
        %2159 = vmatpush.msra.mxu0 0.0
        %2160 = vmatpush.msra.mxu0 0.0
        %2161 = vmatpush.msra.mxu0 0.0
        %2162 = vmatpush.msra.mxu0 0.0
        %2163 = vmatpush.msra.mxu0 0.0
        %2164 = vmatpush.msra.mxu0 %v2124
        %2165 = vmatmul.f32.gmra.mxu0 %v2126
        %v2166 = vpop.f32.mrf.mxu0
        %v2167 = vadd.f32 0.0, %v2166
        %2168 = vmatmul.f32.gmra.mxu0 %v2129
        %v2169 = vpop.f32.mrf.mxu0
        %v2170 = vadd.f32 0.0, %v2169
        %2171 = vmatmul.f32.gmra.mxu0 %v2132
        %v2172 = vpop.f32.mrf.mxu0
        %v2173 = vadd.f32 0.0, %v2172
        %2174 = vmatmul.f32.gmra.mxu0 %v2135
        %v2175 = vpop.f32.mrf.mxu0
        %v2176 = vadd.f32 0.0, %v2175
        %2177 = vmatmul.f32.gmra.mxu0 %v2138
        %v2178 = vpop.f32.mrf.mxu0
        %v2179 = vadd.f32 0.0, %v2178
        %2180 = vmatmul.f32.gmra.mxu0 %v2141
        %v2181 = vpop.f32.mrf.mxu0
        %v2182 = vadd.f32 0.0, %v2181
        %2183 = vmatmul.f32.gmra.mxu0 %v2144
        %v2184 = vpop.f32.mrf.mxu0
        %v2185 = vadd.f32 0.0, %v2184
        %2186 = vmatmul.f32.gmra.mxu0 %v2147
        %v2187 = vpop.f32.mrf.mxu0
        %v2188 = vadd.f32 0.0, %v2187
        %2189 = vdwg.mxu0
        %v2190 = vadd.f32 %v1717, %v2167
        %v2191 = vadd.f32 %v1720, %v2170
        %v2192 = vadd.f32 %v1723, %v2173
        %v2193 = vadd.f32 %v1726, %v2176
        %v2194 = vadd.f32 %v1729, %v2179
        %v2195 = vadd.f32 %v1732, %v2182
        %v2196 = vadd.f32 %v1735, %v2185
        %v2197 = vadd.f32 %v1738, %v2188
        %2198 = vrot.lane.b32.xlu0 %v846, 104
        %v2199 = vpop.permute.xlu0 %2198
        %2200 = vrot.lane.b32.xlu0 %v847, 104
        %v2201 = vpop.permute.xlu0 %2200
        %2202 = vrot.lane.b32.xlu0 %v854, 104
        %v2203 = vpop.permute.xlu0 %2202
        %2204 = vrot.lane.b32.xlu0 %v855, 104
        %v2205 = vpop.permute.xlu0 %2204
        %v2206 = vsel %vm870, %v2199, 0
        %v2208 = vsel %vm870, %v2201, 0
        %v2210 = vsel %vm870, %v2203, 0
        %v2212 = vsel %vm870, %v2205, 0
        %2214 = vmatpush.xpose.msra.mxu0 0.0
        %2215 = vmatpush.xpose.msra.mxu0 0.0
        %2216 = vmatpush.xpose.msra.mxu0 0.0
        %2217 = vmatpush.xpose.msra.mxu0 0.0
        %2218 = vmatpush.xpose.msra.mxu0 0.0
        %2219 = vmatpush.xpose.msra.mxu0 0.0
        %2220 = vmatpush.xpose.msra.mxu0 0.0
        %2221 = vmatpush.xpose.msra.mxu0 0.0
        %2222 = vmatpush.xpose.msra.mxu0 0.0
        %2223 = vmatpush.xpose.msra.mxu0 0.0
        %2224 = vmatpush.xpose.msra.mxu0 0.0
        %2225 = vmatpush.xpose.msra.mxu0 0.0
        %2226 = vmatpush.xpose.msra.mxu0 0.0
        %2227 = vmatpush.xpose.msra.mxu0 0.0
        %2228 = vmatpush.xpose.msra.mxu0 %v2212
        %2229 = vmatpush.xpose.msra.mxu0 %v2210
        %2230 = vmatmul.f32.gmra.mxu0 %v2206
        %v2231 = vpop.f32.mrf.mxu0
        %v2232 = vadd.f32 0.0, %v2231
        %2233 = vmatmul.f32.gmra.mxu0 %v2208
        %v2234 = vpop.f32.mrf.mxu0
        %v2235 = vadd.f32 0.0, %v2234
        %2236 = vdwg.mxu0
        %2237 = vrot.lane.b32.xlu0 %v848, 104
        %v2238 = vpop.permute.xlu0 %2237
        %2239 = vrot.lane.b32.xlu0 %v849, 104
        %v2240 = vpop.permute.xlu0 %2239
        %2241 = vrot.lane.b32.xlu0 %v856, 104
        %v2242 = vpop.permute.xlu0 %2241
        %2243 = vrot.lane.b32.xlu0 %v857, 104
        %v2244 = vpop.permute.xlu0 %2243
        %v2245 = vsel %vm870, %v2238, 0
        %v2247 = vsel %vm870, %v2240, 0
        %v2249 = vsel %vm870, %v2242, 0
        %v2251 = vsel %vm870, %v2244, 0
        %2253 = vmatpush.xpose.msra.mxu0 0.0
        %2254 = vmatpush.xpose.msra.mxu0 0.0
        %2255 = vmatpush.xpose.msra.mxu0 0.0
        %2256 = vmatpush.xpose.msra.mxu0 0.0
        %2257 = vmatpush.xpose.msra.mxu0 0.0
        %2258 = vmatpush.xpose.msra.mxu0 0.0
        %2259 = vmatpush.xpose.msra.mxu0 0.0
        %2260 = vmatpush.xpose.msra.mxu0 0.0
        %2261 = vmatpush.xpose.msra.mxu0 0.0
        %2262 = vmatpush.xpose.msra.mxu0 0.0
        %2263 = vmatpush.xpose.msra.mxu0 0.0
        %2264 = vmatpush.xpose.msra.mxu0 0.0
        %2265 = vmatpush.xpose.msra.mxu0 0.0
        %2266 = vmatpush.xpose.msra.mxu0 0.0
        %2267 = vmatpush.xpose.msra.mxu0 %v2251
        %2268 = vmatpush.xpose.msra.mxu0 %v2249
        %2269 = vmatmul.f32.gmra.mxu0 %v2245
        %v2270 = vpop.f32.mrf.mxu0
        %v2271 = vadd.f32 0.0, %v2270
        %2272 = vmatmul.f32.gmra.mxu0 %v2247
        %v2273 = vpop.f32.mrf.mxu0
        %v2274 = vadd.f32 0.0, %v2273
        %2275 = vdwg.mxu0
        %2276 = vrot.lane.b32.xlu0 %v850, 104
        %v2277 = vpop.permute.xlu0 %2276
        %2278 = vrot.lane.b32.xlu0 %v851, 104
        %v2279 = vpop.permute.xlu0 %2278
        %2280 = vrot.lane.b32.xlu0 %v858, 104
        %v2281 = vpop.permute.xlu0 %2280
        %2282 = vrot.lane.b32.xlu0 %v859, 104
        %v2283 = vpop.permute.xlu0 %2282
        %v2284 = vsel %vm870, %v2277, 0
        %v2286 = vsel %vm870, %v2279, 0
        %v2288 = vsel %vm870, %v2281, 0
        %v2290 = vsel %vm870, %v2283, 0
        %2292 = vmatpush.xpose.msra.mxu0 0.0
        %2293 = vmatpush.xpose.msra.mxu0 0.0
        %2294 = vmatpush.xpose.msra.mxu0 0.0
        %2295 = vmatpush.xpose.msra.mxu0 0.0
        %2296 = vmatpush.xpose.msra.mxu0 0.0
        %2297 = vmatpush.xpose.msra.mxu0 0.0
        %2298 = vmatpush.xpose.msra.mxu0 0.0
        %2299 = vmatpush.xpose.msra.mxu0 0.0
        %2300 = vmatpush.xpose.msra.mxu0 0.0
        %2301 = vmatpush.xpose.msra.mxu0 0.0
        %2302 = vmatpush.xpose.msra.mxu0 0.0
        %2303 = vmatpush.xpose.msra.mxu0 0.0
        %2304 = vmatpush.xpose.msra.mxu0 0.0
        %2305 = vmatpush.xpose.msra.mxu0 0.0
        %2306 = vmatpush.xpose.msra.mxu0 %v2290
        %2307 = vmatpush.xpose.msra.mxu0 %v2288
        %2308 = vmatmul.f32.gmra.mxu0 %v2284
        %v2309 = vpop.f32.mrf.mxu0
        %v2310 = vadd.f32 0.0, %v2309
        %2311 = vmatmul.f32.gmra.mxu0 %v2286
        %v2312 = vpop.f32.mrf.mxu0
        %v2313 = vadd.f32 0.0, %v2312
        %2314 = vdwg.mxu0
        %2315 = vrot.lane.b32.xlu0 %v852, 104
        %v2316 = vpop.permute.xlu0 %2315
        %2317 = vrot.lane.b32.xlu0 %v853, 104
        %v2318 = vpop.permute.xlu0 %2317
        %2319 = vrot.lane.b32.xlu0 %v860, 104
        %v2320 = vpop.permute.xlu0 %2319
        %2321 = vrot.lane.b32.xlu0 %v861, 104
        %v2322 = vpop.permute.xlu0 %2321
        %v2323 = vsel %vm870, %v2316, 0
        %v2325 = vsel %vm870, %v2318, 0
        %v2327 = vsel %vm870, %v2320, 0
        %v2329 = vsel %vm870, %v2322, 0
        %2331 = vmatpush.xpose.msra.mxu0 0.0
        %2332 = vmatpush.xpose.msra.mxu0 0.0
        %2333 = vmatpush.xpose.msra.mxu0 0.0
        %2334 = vmatpush.xpose.msra.mxu0 0.0
        %2335 = vmatpush.xpose.msra.mxu0 0.0
        %2336 = vmatpush.xpose.msra.mxu0 0.0
        %2337 = vmatpush.xpose.msra.mxu0 0.0
        %2338 = vmatpush.xpose.msra.mxu0 0.0
        %2339 = vmatpush.xpose.msra.mxu0 0.0
        %2340 = vmatpush.xpose.msra.mxu0 0.0
        %2341 = vmatpush.xpose.msra.mxu0 0.0
        %2342 = vmatpush.xpose.msra.mxu0 0.0
        %2343 = vmatpush.xpose.msra.mxu0 0.0
        %2344 = vmatpush.xpose.msra.mxu0 0.0
        %2345 = vmatpush.xpose.msra.mxu0 %v2329
        %2346 = vmatpush.xpose.msra.mxu0 %v2327
        %2347 = vmatmul.f32.gmra.mxu0 %v2323
        %v2348 = vpop.f32.mrf.mxu0
        %v2349 = vadd.f32 0.0, %v2348
        %2350 = vmatmul.f32.gmra.mxu0 %v2325
        %v2351 = vpop.f32.mrf.mxu0
        %v2352 = vadd.f32 0.0, %v2351
        %2353 = vdwg.mxu0
        %v2354 = vsel %vm1011, %v2232, -inf
        %2355 = vmax.xlane.f32.xlu0 %v2354
        %v2356 = vpop.xlane.xlu0 %2355
        %v2357 = vsel %vm1011, %v2235, -inf
        %2358 = vmax.xlane.f32.xlu0 %v2357
        %v2359 = vpop.xlane.xlu0 %2358
        %v2360 = vsel %vm1011, %v2271, -inf
        %2361 = vmax.xlane.f32.xlu0 %v2360
        %v2362 = vpop.xlane.xlu0 %2361
        %v2363 = vsel %vm1011, %v2274, -inf
        %2364 = vmax.xlane.f32.xlu0 %v2363
        %v2365 = vpop.xlane.xlu0 %2364
        %v2366 = vsel %vm1011, %v2310, -inf
        %2367 = vmax.xlane.f32.xlu0 %v2366
        %v2368 = vpop.xlane.xlu0 %2367
        %v2369 = vsel %vm1011, %v2313, -inf
        %2370 = vmax.xlane.f32.xlu0 %v2369
        %v2371 = vpop.xlane.xlu0 %2370
        %v2372 = vsel %vm1011, %v2349, -inf
        %2373 = vmax.xlane.f32.xlu0 %v2372
        %v2374 = vpop.xlane.xlu0 %2373
        %v2375 = vsel %vm1011, %v2352, -inf
        %2376 = vmax.xlane.f32.xlu0 %v2375
        %v2377 = vpop.xlane.xlu0 %2376
        %v2378 = vsub.f32 %v2232, %v2356
        %v2379 = vsub.f32 %v2235, %v2359
        %v2380 = vsub.f32 %v2271, %v2362
        %v2381 = vsub.f32 %v2274, %v2365
        %v2382 = vsub.f32 %v2310, %v2368
        %v2383 = vsub.f32 %v2313, %v2371
        %v2384 = vsub.f32 %v2349, %v2374
        %v2385 = vsub.f32 %v2352, %v2377
        %v2386 = vmul.f32 %v2378, 1.442695
        %v2387 = vpow.pop %v2386
        %v2388 = vmul.f32 %v2379, 1.442695
        %v2389 = vpow.pop %v2388
        %v2390 = vmul.f32 %v2380, 1.442695
        %v2391 = vpow.pop %v2390
        %v2392 = vmul.f32 %v2381, 1.442695
        %v2393 = vpow.pop %v2392
        %v2394 = vmul.f32 %v2382, 1.442695
        %v2395 = vpow.pop %v2394
        %v2396 = vmul.f32 %v2383, 1.442695
        %v2397 = vpow.pop %v2396
        %v2398 = vmul.f32 %v2384, 1.442695
        %v2399 = vpow.pop %v2398
        %v2400 = vmul.f32 %v2385, 1.442695
        %v2401 = vpow.pop %v2400
        %v2402 = vsel %vm1011, %v2387, 0.0
        %2403 = vadd.xlane.f32.xlu0 %v2402
        %v2404 = vpop.xlane.xlu0 %2403
        %v2405 = vsel %vm1011, %v2389, 0.0
        %2406 = vadd.xlane.f32.xlu0 %v2405
        %v2407 = vpop.xlane.xlu0 %2406
        %v2408 = vsel %vm1011, %v2391, 0.0
        %2409 = vadd.xlane.f32.xlu0 %v2408
        %v2410 = vpop.xlane.xlu0 %2409
        %v2411 = vsel %vm1011, %v2393, 0.0
        %2412 = vadd.xlane.f32.xlu0 %v2411
        %v2413 = vpop.xlane.xlu0 %2412
        %v2414 = vsel %vm1011, %v2395, 0.0
        %2415 = vadd.xlane.f32.xlu0 %v2414
        %v2416 = vpop.xlane.xlu0 %2415
        %v2417 = vsel %vm1011, %v2397, 0.0
        %2418 = vadd.xlane.f32.xlu0 %v2417
        %v2419 = vpop.xlane.xlu0 %2418
        %v2420 = vsel %vm1011, %v2399, 0.0
        %2421 = vadd.xlane.f32.xlu0 %v2420
        %v2422 = vpop.xlane.xlu0 %2421
        %v2423 = vsel %vm1011, %v2401, 0.0
        %2424 = vadd.xlane.f32.xlu0 %v2423
        %v2425 = vpop.xlane.xlu0 %2424
        %v2426 = vrcp.pop %v2404
        %v2427 = vrcp.pop %v2407
        %v2428 = vrcp.pop %v2410
        %v2429 = vrcp.pop %v2413
        %v2430 = vrcp.pop %v2416
        %v2431 = vrcp.pop %v2419
        %v2432 = vrcp.pop %v2422
        %v2433 = vrcp.pop %v2425
        %v2434 = vmul.f32 %v2387, %v2426
        %v2435 = vmul.f32 %v2389, %v2427
        %v2436 = vmul.f32 %v2391, %v2428
        %v2437 = vmul.f32 %v2393, %v2429
        %v2438 = vmul.f32 %v2395, %v2430
        %v2439 = vmul.f32 %v2397, %v2431
        %v2440 = vmul.f32 %v2399, %v2432
        %v2441 = vmul.f32 %v2401, %v2433
        %2442 = vrot.lane.b32.xlu0 %v862, 104
        %v2443 = vpop.permute.xlu0 %2442
        %2444 = vrot.lane.b32.xlu0 %v863, 104
        %v2445 = vpop.permute.xlu0 %2444
        %v2449 = vsel %vm1011, %v2434, 0
        %v2452 = vsel %vm1011, %v2435, 0
        %2454 = vmatpush.msra.mxu0 0.0
        %2455 = vmatpush.msra.mxu0 0.0
        %2456 = vmatpush.msra.mxu0 0.0
        %2457 = vmatpush.msra.mxu0 0.0
        %2458 = vmatpush.msra.mxu0 0.0
        %2459 = vmatpush.msra.mxu0 0.0
        %2460 = vmatpush.msra.mxu0 0.0
        %2461 = vmatpush.msra.mxu0 0.0
        %2462 = vmatpush.msra.mxu0 0.0
        %2463 = vmatpush.msra.mxu0 0.0
        %2464 = vmatpush.msra.mxu0 0.0
        %2465 = vmatpush.msra.mxu0 0.0
        %2466 = vmatpush.msra.mxu0 0.0
        %2467 = vmatpush.msra.mxu0 0.0
        %2468 = vmatpush.msra.mxu0 %v2445
        %2469 = vmatpush.msra.mxu0 %v2443
        %2470 = vmatmul.f32.gmra.mxu0 %v2449
        %v2471 = vpop.f32.mrf.mxu0
        %v2472 = vadd.f32 0.0, %v2471
        %2473 = vmatmul.f32.gmra.mxu0 %v2452
        %v2474 = vpop.f32.mrf.mxu0
        %v2475 = vadd.f32 0.0, %v2474
        %2476 = vdwg.mxu0
        %2477 = vrot.lane.b32.xlu0 %v864, 104
        %v2478 = vpop.permute.xlu0 %2477
        %2479 = vrot.lane.b32.xlu0 %v865, 104
        %v2480 = vpop.permute.xlu0 %2479
        %v2484 = vsel %vm1011, %v2436, 0
        %v2487 = vsel %vm1011, %v2437, 0
        %2489 = vmatpush.msra.mxu0 0.0
        %2490 = vmatpush.msra.mxu0 0.0
        %2491 = vmatpush.msra.mxu0 0.0
        %2492 = vmatpush.msra.mxu0 0.0
        %2493 = vmatpush.msra.mxu0 0.0
        %2494 = vmatpush.msra.mxu0 0.0
        %2495 = vmatpush.msra.mxu0 0.0
        %2496 = vmatpush.msra.mxu0 0.0
        %2497 = vmatpush.msra.mxu0 0.0
        %2498 = vmatpush.msra.mxu0 0.0
        %2499 = vmatpush.msra.mxu0 0.0
        %2500 = vmatpush.msra.mxu0 0.0
        %2501 = vmatpush.msra.mxu0 0.0
        %2502 = vmatpush.msra.mxu0 0.0
        %2503 = vmatpush.msra.mxu0 %v2480
        %2504 = vmatpush.msra.mxu0 %v2478
        %2505 = vmatmul.f32.gmra.mxu0 %v2484
        %v2506 = vpop.f32.mrf.mxu0
        %v2507 = vadd.f32 0.0, %v2506
        %2508 = vmatmul.f32.gmra.mxu0 %v2487
        %v2509 = vpop.f32.mrf.mxu0
        %v2510 = vadd.f32 0.0, %v2509
        %2511 = vdwg.mxu0
        %2512 = vrot.lane.b32.xlu0 %v866, 104
        %v2513 = vpop.permute.xlu0 %2512
        %2514 = vrot.lane.b32.xlu0 %v867, 104
        %v2515 = vpop.permute.xlu0 %2514
        %v2519 = vsel %vm1011, %v2438, 0
        %v2522 = vsel %vm1011, %v2439, 0
        %2524 = vmatpush.msra.mxu0 0.0
        %2525 = vmatpush.msra.mxu0 0.0
        %2526 = vmatpush.msra.mxu0 0.0
        %2527 = vmatpush.msra.mxu0 0.0
        %2528 = vmatpush.msra.mxu0 0.0
        %2529 = vmatpush.msra.mxu0 0.0
        %2530 = vmatpush.msra.mxu0 0.0
        %2531 = vmatpush.msra.mxu0 0.0
        %2532 = vmatpush.msra.mxu0 0.0
        %2533 = vmatpush.msra.mxu0 0.0
        %2534 = vmatpush.msra.mxu0 0.0
        %2535 = vmatpush.msra.mxu0 0.0
        %2536 = vmatpush.msra.mxu0 0.0
        %2537 = vmatpush.msra.mxu0 0.0
        %2538 = vmatpush.msra.mxu0 %v2515
        %2539 = vmatpush.msra.mxu0 %v2513
        %2540 = vmatmul.f32.gmra.mxu0 %v2519
        %v2541 = vpop.f32.mrf.mxu0
        %v2542 = vadd.f32 0.0, %v2541
        %2543 = vmatmul.f32.gmra.mxu0 %v2522
        %v2544 = vpop.f32.mrf.mxu0
        %v2545 = vadd.f32 0.0, %v2544
        %2546 = vdwg.mxu0
        %2547 = vrot.lane.b32.xlu0 %v868, 104
        %v2548 = vpop.permute.xlu0 %2547
        %2549 = vrot.lane.b32.xlu0 %v869, 104
        %v2550 = vpop.permute.xlu0 %2549
        %v2554 = vsel %vm1011, %v2440, 0
        %v2557 = vsel %vm1011, %v2441, 0
        %2559 = vmatpush.msra.mxu0 0.0
        %2560 = vmatpush.msra.mxu0 0.0
        %2561 = vmatpush.msra.mxu0 0.0
        %2562 = vmatpush.msra.mxu0 0.0
        %2563 = vmatpush.msra.mxu0 0.0
        %2564 = vmatpush.msra.mxu0 0.0
        %2565 = vmatpush.msra.mxu0 0.0
        %2566 = vmatpush.msra.mxu0 0.0
        %2567 = vmatpush.msra.mxu0 0.0
        %2568 = vmatpush.msra.mxu0 0.0
        %2569 = vmatpush.msra.mxu0 0.0
        %2570 = vmatpush.msra.mxu0 0.0
        %2571 = vmatpush.msra.mxu0 0.0
        %2572 = vmatpush.msra.mxu0 0.0
        %2573 = vmatpush.msra.mxu0 %v2550
        %2574 = vmatpush.msra.mxu0 %v2548
        %2575 = vmatmul.f32.gmra.mxu0 %v2554
        %v2576 = vpop.f32.mrf.mxu0
        %v2577 = vadd.f32 0.0, %v2576
        %2578 = vmatmul.f32.gmra.mxu0 %v2557
        %v2579 = vpop.f32.mrf.mxu0
        %v2580 = vadd.f32 0.0, %v2579
        %2581 = vdwg.mxu0
        %v2582 = vld [vmem:[#allocation15 + $0x18] sm:$0xff]
        %v2584 = vsel %vm870, %v2472, 0
        %v2587 = vsel %vm870, %v2475, 0
        %v2590 = vsel %vm870, %v2507, 0
        %v2593 = vsel %vm870, %v2510, 0
        %v2596 = vsel %vm870, %v2542, 0
        %v2599 = vsel %vm870, %v2545, 0
        %v2602 = vsel %vm870, %v2577, 0
        %v2605 = vsel %vm870, %v2580, 0
        %2607 = vmatpush.msra.mxu0 0.0
        %2608 = vmatpush.msra.mxu0 0.0
        %2609 = vmatpush.msra.mxu0 0.0
        %2610 = vmatpush.msra.mxu0 0.0
        %2611 = vmatpush.msra.mxu0 0.0
        %2612 = vmatpush.msra.mxu0 0.0
        %2613 = vmatpush.msra.mxu0 0.0
        %2614 = vmatpush.msra.mxu0 0.0
        %2615 = vmatpush.msra.mxu0 0.0
        %2616 = vmatpush.msra.mxu0 0.0
        %2617 = vmatpush.msra.mxu0 0.0
        %2618 = vmatpush.msra.mxu0 0.0
        %2619 = vmatpush.msra.mxu0 0.0
        %2620 = vmatpush.msra.mxu0 0.0
        %2621 = vmatpush.msra.mxu0 0.0
        %2622 = vmatpush.msra.mxu0 %v2582
        %2623 = vmatmul.f32.gmra.mxu0 %v2584
        %v2624 = vpop.f32.mrf.mxu0
        %v2625 = vadd.f32 0.0, %v2624
        %2626 = vmatmul.f32.gmra.mxu0 %v2587
        %v2627 = vpop.f32.mrf.mxu0
        %v2628 = vadd.f32 0.0, %v2627
        %2629 = vmatmul.f32.gmra.mxu0 %v2590
        %v2630 = vpop.f32.mrf.mxu0
        %v2631 = vadd.f32 0.0, %v2630
        %2632 = vmatmul.f32.gmra.mxu0 %v2593
        %v2633 = vpop.f32.mrf.mxu0
        %v2634 = vadd.f32 0.0, %v2633
        %2635 = vmatmul.f32.gmra.mxu0 %v2596
        %v2636 = vpop.f32.mrf.mxu0
        %v2637 = vadd.f32 0.0, %v2636
        %2638 = vmatmul.f32.gmra.mxu0 %v2599
        %v2639 = vpop.f32.mrf.mxu0
        %v2640 = vadd.f32 0.0, %v2639
        %2641 = vmatmul.f32.gmra.mxu0 %v2602
        %v2642 = vpop.f32.mrf.mxu0
        %v2643 = vadd.f32 0.0, %v2642
        %2644 = vmatmul.f32.gmra.mxu0 %v2605
        %v2645 = vpop.f32.mrf.mxu0
        %v2646 = vadd.f32 0.0, %v2645
        %2647 = vdwg.mxu0
        %v2648 = vadd.f32 %v2190, %v2625
        %v2649 = vadd.f32 %v2191, %v2628
        %v2650 = vadd.f32 %v2192, %v2631
        %v2651 = vadd.f32 %v2193, %v2634
        %v2652 = vadd.f32 %v2194, %v2637
        %v2653 = vadd.f32 %v2195, %v2640
        %v2654 = vadd.f32 %v2196, %v2643
        %v2655 = vadd.f32 %v2197, %v2646
        %v2656 = vld [vmem:[%s10] sm:$0x1]
        %v2658 = vperm.slane %v2656, 0
        %v2660 = vadd.f32 %v2648, %v2658
        %v2661 = vadd.f32 %v2649, %v2658
        %v2662 = vadd.f32 %v2650, %v2658
        %v2663 = vadd.f32 %v2651, %v2658
        %v2664 = vadd.f32 %v2652, %v2658
        %v2665 = vadd.f32 %v2653, %v2658
        %v2666 = vadd.f32 %v2654, %v2658
        %v2667 = vadd.f32 %v2655, %v2658
        %2668 = vst.msk [vmem:[%s574] sm:$0xff] %vm780, %v2660
        %2669 = vst.msk [vmem:[%s574 + $0x8] sm:$0xff] %vm780, %v2661
        %2670 = vst.msk [vmem:[%s574 + $0x10] sm:$0xff] %vm780, %v2662
        %2671 = vst.msk [vmem:[%s574 + $0x18] sm:$0xff] %vm780, %v2663
        %2672 = vst.msk [vmem:[%s574 + $0x20] sm:$0xff] %vm780, %v2664
        %2673 = vst.msk [vmem:[%s574 + $0x28] sm:$0xff] %vm780, %v2665
        %2674 = vst.msk [vmem:[%s574 + $0x30] sm:$0xff] %vm780, %v2666
        %2675 = vst.msk [vmem:[%s574 + $0x38] sm:$0xff] %vm780, %v2667
        %s2676 = sand.u32 %s303, 1
        %s2677 = scalar_lea.sflag [#allocation6], %s2676
        %s2678 = sand.u32 %s303, 1
        %s2679 = smul.addr %s2678, 64
        %s2680 = scalar_lea.vmem [#allocation16], %s2679
        // Predicated region
        $region97: #{tpu_custom_call.1} parent=63 // pred_check
          %p2681 = pneg %p313
        $region98: #{tpu_custom_call.1} parent=63 // pred_check_branch
          %2683 = sbr.rel (%p2681) target = $region100
        $region99: #{tpu_custom_call.1} parent=63 // pred_region
          %s2684 = smul.u32 4, %s37
          %s2685 = smul.u32 2, %s38
          %2687 = vsyncadd %s2677, 0
          %s2688 = smul.addr %s2684, 2
          %s2689 = sadd.s32 %s2685, %s2688
          %s2690 = smul.addr %s2689, 8
          %s2691 = scalar_lea.hbm %s11, %s2690
          %s2692 = sshll.u32 %s2680, 4
          %s2693 = int_to_ptr.vmem [resolvable:$true] %s2692
          %s2694 = sshll.u32 %s2691, 4
          %s2695 = int_to_ptr.hbm [resolvable:$true] %s2694
          %2700 = dma.vmem_to_hbm [thread:$0]  %s2693, 1024, %s2695, %s2677, 128, 128, 8
        $region100: #{tpu_custom_call.1} parent=63 // pred_fallthru
          _
      $region64: #{tpu_custom_call.1} parent=5 // pred_fallthru
        _
      %p2701 = scmp.le.s32.totalorder 2, %s28
      // Predicated region
      $region101: #{tpu_custom_call.1} parent=5 // pred_check
        %p2702 = pneg %p2701
      $region102: #{tpu_custom_call.1} parent=5 // pred_check_branch
        %2704 = sbr.rel (%p2702) target = $region104
      $region103: #{tpu_custom_call.1} parent=5 // pred_region
        %s2705 = ssub.s32 %s28, 2
        // Predicated region
        $region105: #{tpu_custom_call.1} parent=103 // pred_check
          %p2706 = pneg %p319
        $region106: #{tpu_custom_call.1} parent=103 // pred_check_branch
          %2708 = sbr.rel (%p2706) target = $region108
        $region107: #{tpu_custom_call.1} parent=103 // pred_region
          %s2709 = sand.u32 %s304, 1
          %s2710 = scalar_lea.sflag [#allocation6], %s2709
          %s2711 = sand.u32 %s304, 1
          %s2712 = smul.addr %s2711, 64
          %s2713 = scalar_lea.vmem [#allocation16], %s2712
          %2715 = dma.done %s2710, 1024
        $region108: #{tpu_custom_call.1} parent=103 // pred_fallthru
          _
      $region104: #{tpu_custom_call.1} parent=5 // pred_fallthru
        _
    $region6: #{tpu_custom_call.1} parent=1 // loop_footer
      %s32 = sadd.s32 1, %s28
    $region7: #{tpu_custom_call.1} parent=1 // loop_footer_branch
      %27 = sbr.rel target = $region3
    $region8: #{tpu_custom_call.1} parent=1 // loop_exit
      _
    %2716 = vsyncpa [#allocation5], 1
    %s2717 = scalar_lea.sflag [#allocation5], 1
    %2718 = vsyncpa %s2717, 1
    %2719 = vsyncpa [#allocation8], 1
    %s2720 = scalar_lea.sflag [#allocation8], 1
    %2721 = vsyncpa %s2720, 1
    %2722 = vsyncpa [#allocation11], 1
    %2723 = vsyncpa [#allocation14], 1
    %2724 = vsyncpa [#allocation6], 1
    %s2725 = scalar_lea.sflag [#allocation6], 1
    %2726 = vsyncpa %s2725, 1

</llo_original>
